<compile_context>
chip_gen: v6e
topology: v6e:2x2x1
jax: 0.10.0
libtpu: 0.0.40
codegen_flags: <defaults>
</compile_context>

<pallas_src>
import numpy as np
import jax
import jax.numpy as jnp
from jax import lax
from jax.experimental import pallas as pl
from jax.experimental.pallas import tpu as pltpu

# ---- model hyper-parameters (small, consistent with the module) -------------
D_MODEL = 32        # params.layer_sizes[0]
D_FF = 64           # params.layer_sizes[1]  (transformer feed-forward dim)
D_OUT = 16          # params.layer_sizes[-1] (decoder output dim)
NUM_HEADS = 4       # params.num_heads  (D_MODEL % NUM_HEADS == 0)
HEAD_DIM = D_MODEL // NUM_HEADS
NUM_LAYERS = 2      # params.num_hidden_layers
SEQ = 8             # x.size(0): number of input points == attention seq length
MAX_LEN = 400       # PositionalEncoding max_len


def _layernorm(x, w, b, eps=1e-5):
    mu = jnp.mean(x, axis=-1, keepdims=True)
    var = jnp.mean((x - mu) ** 2, axis=-1, keepdims=True)
    return (x - mu) * lax.rsqrt(var + eps) * w + b


# ---- single fused Pallas kernel ---------------------------------------------
def transformer_net_kernel(x_ref, pe_ref,
                           wqkv_ref, bqkv_ref, wo_ref, bo_ref,
                           w1_ref, b1_ref, w2_ref, b2_ref,
                           ln1w_ref, ln1b_ref, ln2w_ref, ln2b_ref,
                           dec_w_ref, dec_b_ref,
                           out_ref):
    """PE add -> NUM_LAYERS x TransformerEncoderLayer (post-norm, ReLU) -> decoder."""
    L = x_ref.shape[0]

    # PositionalEncoding (dropout = identity at eval time).
    h = x_ref[...] + pe_ref[:L, :]                        # (L, D)

    # generate_square_subsequent_mask: 0 on/below diagonal, -inf above.
    row = lax.broadcasted_iota(jnp.int32, (L, L), 0)
    col = lax.broadcasted_iota(jnp.int32, (L, L), 1)
    neg_mask = jnp.where(col <= row, 0.0, -jnp.inf).astype(jnp.float32)  # (L, L)

    scale = 1.0 / float(np.sqrt(HEAD_DIM))

    for l in range(NUM_LAYERS):            # static unroll (NUM_LAYERS == 2)
        # ---- self-attention: fused QKV projection (single MXU stream) -------
        qkv = jnp.dot(h, wqkv_ref[l],
                      preferred_element_type=jnp.float32) + bqkv_ref[l]   # (L, 3D)
        q = qkv[:, 0 * D_MODEL:1 * D_MODEL]
        k = qkv[:, 1 * D_MODEL:2 * D_MODEL]
        v = qkv[:, 2 * D_MODEL:3 * D_MODEL]

        # head split -> (H, L, hd); batched dots over the head dim
        qh = jnp.stack([q[:, hh * HEAD_DIM:(hh + 1) * HEAD_DIM]
                        for hh in range(NUM_HEADS)], axis=0)
        kh = jnp.stack([k[:, hh * HEAD_DIM:(hh + 1) * HEAD_DIM]
                        for hh in range(NUM_HEADS)], axis=0)
        vh = jnp.stack([v[:, hh * HEAD_DIM:(hh + 1) * HEAD_DIM]
                        for hh in range(NUM_HEADS)], axis=0)

        s = jnp.einsum('hqd,hkd->hqk', qh * scale, kh,
                       preferred_element_type=jnp.float32)                # (H, L, L)
        s = s + neg_mask[None, :, :]
        s = s - jnp.max(s, axis=-1, keepdims=True)
        p = jnp.exp(s)
        p = p * pl.reciprocal(jnp.sum(p, axis=-1, keepdims=True), approx=True)
        ctx = jnp.einsum('hqk,hkd->hqd', p, vh,
                         preferred_element_type=jnp.float32)              # (H, L, hd)

        # merge heads back on the lane axis, single out-projection
        ctx2d = jnp.concatenate([ctx[hh] for hh in range(NUM_HEADS)], axis=-1)  # (L, D)
        attn = jnp.dot(ctx2d, wo_ref[l],
                       preferred_element_type=jnp.float32) + bo_ref[l]

        # ---- residual + LayerNorm1 ------------------------------------------
        h1 = _layernorm(h + attn, ln1w_ref[l], ln1b_ref[l])

        # ---- feed-forward: linear1 -> ReLU -> linear2 ------------------------
        ff = jnp.dot(h1, w1_ref[l], preferred_element_type=jnp.float32) + b1_ref[l]
        ff = jnp.maximum(ff, 0.0)
        ff = jnp.dot(ff, w2_ref[l], preferred_element_type=jnp.float32) + b2_ref[l]

        # ---- residual + LayerNorm2 -------------------------------------------
        h = _layernorm(h1 + ff, ln2w_ref[l], ln2b_ref[l])

    # ---- decoder: nn.Linear(D_MODEL, D_OUT) ----------------------------------
    out_ref[...] = (jnp.dot(h, dec_w_ref[...],
                            preferred_element_type=jnp.float32) + dec_b_ref[...])


# ---- pallas_call wrapper -----------------------------------------------------
def transformer_net_forward(x, params):
    n = x.shape[0]
    args = (x, params["pe"],
            params["wqkv"], params["bqkv"], params["wo"], params["bo"],
            params["w1"], params["b1"], params["w2"], params["b2"],
            params["ln1w"], params["ln1b"], params["ln2w"], params["ln2b"],
            params["dec_w"], params["dec_b"])
    # No grid: single invocation, whole arrays DMA'd to VMEM (~120 KB total).
    return pl.pallas_call(
        transformer_net_kernel,
        out_shape=jax.ShapeDtypeStruct((n, D_OUT), jnp.float32),
    )(*args)


# ---- parameter construction (deterministic, synthetic) -----------------------
def _uniform(key, shape, limit):
    return jax.random.uniform(key, shape, jnp.float32, -limit, limit)


def make_positional_encoding(max_len, d_model):
    position = jnp.arange(max_len, dtype=jnp.float32)[:, None]
    div_term = jnp.exp(jnp.arange(0, d_model, 2, dtype=jnp.float32)
                       * (-np.log(10000.0) / d_model))
    div_term2 = jnp.exp(jnp.arange(0, d_model - 1, 2, dtype=jnp.float32)
                        * (-np.log(10000.0) / d_model))
    pe = jnp.zeros((max_len, d_model), jnp.float32)
    pe = pe.at[:, 0::2].set(jnp.sin(position * div_term))
    pe = pe.at[:, 1::2].set(jnp.cos(position * div_term2))
    return pe


def init_params(key):
    lim_d = 1.0 / np.sqrt(D_MODEL)
    lim_f = 1.0 / np.sqrt(D_FF)
    wqkv, bqkv, wo, bo = [], [], [], []
    w1, b1, w2, b2 = [], [], [], []
    ln1w, ln1b, ln2w, ln2b = [], [], [], []
    for _ in range(NUM_LAYERS):
        key, *ks = jax.random.split(key, 9)
        wq = _uniform(ks[0], (D_MODEL, D_MODEL), lim_d)
        wk = _uniform(ks[1], (D_MODEL, D_MODEL), lim_d)
        wv = _uniform(ks[2], (D_MODEL, D_MODEL), lim_d)
        wqkv.append(jnp.concatenate([wq, wk, wv], axis=1))     # (D, 3D) fused QKV
        bqkv.append(jnp.zeros((1, 3 * D_MODEL), jnp.float32))
        wo.append(_uniform(ks[3], (D_MODEL, D_MODEL), lim_d))
        bo.append(_uniform(ks[4], (1, D_MODEL), lim_d))
        w1.append(_uniform(ks[5], (D_MODEL, D_FF), lim_d))
        b1.append(_uniform(ks[6], (1, D_FF), lim_d))
        w2.append(_uniform(ks[7], (D_FF, D_MODEL), lim_f))
        b2.append(jnp.zeros((1, D_MODEL), jnp.float32))
        ln1w.append(jnp.ones((1, D_MODEL), jnp.float32))
        ln1b.append(jnp.zeros((1, D_MODEL), jnp.float32))
        ln2w.append(jnp.ones((1, D_MODEL), jnp.float32))
        ln2b.append(jnp.zeros((1, D_MODEL), jnp.float32))
    key, kd = jax.random.split(key)
    params = {
        "pe": make_positional_encoding(MAX_LEN, D_MODEL),
        "wqkv": jnp.stack(wqkv), "bqkv": jnp.stack(bqkv),
        "wo": jnp.stack(wo), "bo": jnp.stack(bo),
        "w1": jnp.stack(w1), "b1": jnp.stack(b1),
        "w2": jnp.stack(w2), "b2": jnp.stack(b2),
        "ln1w": jnp.stack(ln1w), "ln1b": jnp.stack(ln1b),
        "ln2w": jnp.stack(ln2w), "ln2b": jnp.stack(ln2b),
        # decoder: init_weights() -> weight ~ U(-0.1, 0.1), bias = 0
        "dec_w": _uniform(kd, (D_MODEL, D_OUT), 0.1),
        "dec_b": jnp.zeros((1, D_OUT), jnp.float32),
    }
    return params


if __name__ == "__main__":
    key = jax.random.PRNGKey(0)
    pkey, xkey = jax.random.split(key)
    params = init_params(pkey)
    x = jax.random.normal(xkey, (SEQ, D_MODEL), dtype=jnp.float32)

    out = transformer_net_forward(x, params)
    out = jax.block_until_ready(out)

    assert out.shape == (SEQ, D_OUT), out.shape
    assert bool(jnp.all(jnp.isfinite(out)))
    print("KERNEL_OK")
</pallas_src>

<mosaic_0001>
module attributes {stable_mosaic.version = 11 : i64} {
  func.func @transformer_net_kernel(%arg0: memref<8x32xf32, #tpu.memory_space<vmem>>, %arg1: memref<400x32xf32, #tpu.memory_space<vmem>>, %arg2: memref<2x32x96xf32, #tpu.memory_space<vmem>>, %arg3: memref<2x1x96xf32, #tpu.memory_space<vmem>>, %arg4: memref<2x32x32xf32, #tpu.memory_space<vmem>>, %arg5: memref<2x1x32xf32, #tpu.memory_space<vmem>>, %arg6: memref<2x32x64xf32, #tpu.memory_space<vmem>>, %arg7: memref<2x1x64xf32, #tpu.memory_space<vmem>>, %arg8: memref<2x64x32xf32, #tpu.memory_space<vmem>>, %arg9: memref<2x1x32xf32, #tpu.memory_space<vmem>>, %arg10: memref<2x1x32xf32, #tpu.memory_space<vmem>>, %arg11: memref<2x1x32xf32, #tpu.memory_space<vmem>>, %arg12: memref<2x1x32xf32, #tpu.memory_space<vmem>>, %arg13: memref<2x1x32xf32, #tpu.memory_space<vmem>>, %arg14: memref<32x16xf32, #tpu.memory_space<vmem>>, %arg15: memref<1x16xf32, #tpu.memory_space<vmem>>, %arg16: memref<8x16xf32, #tpu.memory_space<vmem>>) attributes {dimension_semantics = [], scalar_prefetch = 0 : i64, scratch_operands = 0 : i64, tpu.core_type = #tpu.core_type<tc>} {
    %c0 = arith.constant 0 : index
    %c0_0 = arith.constant 0 : index
    %0 = vector.load %arg0[%c0, %c0_0] : memref<8x32xf32, #tpu.memory_space<vmem>>, vector<8x32xf32>
    %c0_1 = arith.constant 0 : index
    %c0_2 = arith.constant 0 : index
    %1 = vector.load %arg1[%c0_1, %c0_2] : memref<400x32xf32, #tpu.memory_space<vmem>>, vector<8x32xf32>
    %2 = arith.addf %0, %1 : vector<8x32xf32>
    %3 = tpu.iota {dimensions = array<i32: 0>} : vector<8x8xi32>
    %4 = tpu.iota {dimensions = array<i32: 1>} : vector<8x8xi32>
    %5 = arith.cmpi sle, %4, %3 : vector<8x8xi32>
    %cst = arith.constant 0.000000e+00 : f32
    %cst_3 = arith.constant 0xFF800000 : f32
    %6 = vector.broadcast %cst : f32 to vector<8x8xf32>
    %7 = vector.broadcast %cst_3 : f32 to vector<8x8xf32>
    %8 = arith.select %5, %6, %7 : vector<8x8xi1>, vector<8x8xf32>
    %c0_4 = arith.constant 0 : index
    %c0_5 = arith.constant 0 : index
    %c0_6 = arith.constant 0 : index
    %9 = vector.load %arg2[%c0_4, %c0_5, %c0_6] : memref<2x32x96xf32, #tpu.memory_space<vmem>>, vector<1x32x96xf32>
    %10 = vector.shape_cast %9 : vector<1x32x96xf32> to vector<32x96xf32>
    %cst_7 = arith.constant dense<0.000000e+00> : vector<8x96xf32>
    %11 = tpu.matmul %2, %10, %cst_7 {dimension_numbers = #tpu.dot_dimension_numbers<[1], [0], [0], [1], [0, 0, 1, 1], [], []>} : vector<8x32xf32>, vector<32x96xf32>, vector<8x96xf32> -> vector<8x96xf32>
    %c0_8 = arith.constant 0 : index
    %c0_9 = arith.constant 0 : index
    %c0_10 = arith.constant 0 : index
    %12 = vector.load %arg3[%c0_8, %c0_9, %c0_10] : memref<2x1x96xf32, #tpu.memory_space<vmem>>, vector<1x1x96xf32>
    %13 = vector.shape_cast %12 : vector<1x1x96xf32> to vector<1x96xf32>
    %14 = vector.broadcast %13 : vector<1x96xf32> to vector<8x96xf32>
    %15 = arith.addf %11, %14 : vector<8x96xf32>
    %16 = vector.extract_strided_slice %15 {offsets = [0, 0], sizes = [8, 32], strides = [1, 1]} : vector<8x96xf32> to vector<8x32xf32>
    %17 = vector.extract_strided_slice %15 {offsets = [0, 32], sizes = [8, 32], strides = [1, 1]} : vector<8x96xf32> to vector<8x32xf32>
    %18 = vector.extract_strided_slice %15 {offsets = [0, 64], sizes = [8, 32], strides = [1, 1]} : vector<8x96xf32> to vector<8x32xf32>
    %19 = vector.extract_strided_slice %16 {offsets = [0, 0], sizes = [8, 8], strides = [1, 1]} : vector<8x32xf32> to vector<8x8xf32>
    %20 = vector.extract_strided_slice %16 {offsets = [0, 8], sizes = [8, 8], strides = [1, 1]} : vector<8x32xf32> to vector<8x8xf32>
    %21 = vector.extract_strided_slice %16 {offsets = [0, 16], sizes = [8, 8], strides = [1, 1]} : vector<8x32xf32> to vector<8x8xf32>
    %22 = vector.extract_strided_slice %16 {offsets = [0, 24], sizes = [8, 8], strides = [1, 1]} : vector<8x32xf32> to vector<8x8xf32>
    %23 = vector.shape_cast %19 : vector<8x8xf32> to vector<1x8x8xf32>
    %24 = vector.shape_cast %20 : vector<8x8xf32> to vector<1x8x8xf32>
    %25 = vector.shape_cast %21 : vector<8x8xf32> to vector<1x8x8xf32>
    %26 = vector.shape_cast %22 : vector<8x8xf32> to vector<1x8x8xf32>
    %27 = tpu.concatenate %23, %24, %25, %26 in 0 : vector<1x8x8xf32>, vector<1x8x8xf32>, vector<1x8x8xf32>, vector<1x8x8xf32> -> vector<4x8x8xf32>
    %28 = vector.extract_strided_slice %17 {offsets = [0, 0], sizes = [8, 8], strides = [1, 1]} : vector<8x32xf32> to vector<8x8xf32>
    %29 = vector.extract_strided_slice %17 {offsets = [0, 8], sizes = [8, 8], strides = [1, 1]} : vector<8x32xf32> to vector<8x8xf32>
    %30 = vector.extract_strided_slice %17 {offsets = [0, 16], sizes = [8, 8], strides = [1, 1]} : vector<8x32xf32> to vector<8x8xf32>
    %31 = vector.extract_strided_slice %17 {offsets = [0, 24], sizes = [8, 8], strides = [1, 1]} : vector<8x32xf32> to vector<8x8xf32>
    %32 = vector.shape_cast %28 : vector<8x8xf32> to vector<1x8x8xf32>
    %33 = vector.shape_cast %29 : vector<8x8xf32> to vector<1x8x8xf32>
    %34 = vector.shape_cast %30 : vector<8x8xf32> to vector<1x8x8xf32>
    %35 = vector.shape_cast %31 : vector<8x8xf32> to vector<1x8x8xf32>
    %36 = tpu.concatenate %32, %33, %34, %35 in 0 : vector<1x8x8xf32>, vector<1x8x8xf32>, vector<1x8x8xf32>, vector<1x8x8xf32> -> vector<4x8x8xf32>
    %37 = vector.extract_strided_slice %18 {offsets = [0, 0], sizes = [8, 8], strides = [1, 1]} : vector<8x32xf32> to vector<8x8xf32>
    %38 = vector.extract_strided_slice %18 {offsets = [0, 8], sizes = [8, 8], strides = [1, 1]} : vector<8x32xf32> to vector<8x8xf32>
    %39 = vector.extract_strided_slice %18 {offsets = [0, 16], sizes = [8, 8], strides = [1, 1]} : vector<8x32xf32> to vector<8x8xf32>
    %40 = vector.extract_strided_slice %18 {offsets = [0, 24], sizes = [8, 8], strides = [1, 1]} : vector<8x32xf32> to vector<8x8xf32>
    %41 = vector.shape_cast %37 : vector<8x8xf32> to vector<1x8x8xf32>
    %42 = vector.shape_cast %38 : vector<8x8xf32> to vector<1x8x8xf32>
    %43 = vector.shape_cast %39 : vector<8x8xf32> to vector<1x8x8xf32>
    %44 = vector.shape_cast %40 : vector<8x8xf32> to vector<1x8x8xf32>
    %45 = tpu.concatenate %41, %42, %43, %44 in 0 : vector<1x8x8xf32>, vector<1x8x8xf32>, vector<1x8x8xf32>, vector<1x8x8xf32> -> vector<4x8x8xf32>
    %cst_11 = arith.constant 0.353553385 : f32
    %46 = vector.broadcast %cst_11 : f32 to vector<4x8x8xf32>
    %47 = arith.mulf %27, %46 : vector<4x8x8xf32>
    "tpu.trace_start"() <{level = 10 : i32, message = "hqd,hkd->hqk"}> : () -> ()
    %cst_12 = arith.constant dense<0.000000e+00> : vector<4x8x8xf32>
    %48 = tpu.matmul %47, %36, %cst_12 {dimension_numbers = #tpu.dot_dimension_numbers<[2], [2], [1], [1], [0, 0, 0, 1, 1, 1], [0], [0]>} : vector<4x8x8xf32>, vector<4x8x8xf32>, vector<4x8x8xf32> -> vector<4x8x8xf32>
    "tpu.trace_stop"() : () -> ()
    %49 = vector.shape_cast %8 : vector<8x8xf32> to vector<1x8x8xf32>
    %50 = vector.broadcast %49 : vector<1x8x8xf32> to vector<4x8x8xf32>
    %51 = arith.addf %48, %50 : vector<4x8x8xf32>
    %cst_13 = arith.constant dense<0xFF800000> : vector<4x8xf32>
    %52 = vector.multi_reduction <maximumf>, %51, %cst_13 [2] : vector<4x8x8xf32> to vector<4x8xf32>
    %53 = vector.shape_cast %52 : vector<4x8xf32> to vector<4x8x1xf32>
    %54 = vector.broadcast %53 : vector<4x8x1xf32> to vector<4x8x8xf32>
    %55 = arith.subf %51, %54 : vector<4x8x8xf32>
    %56 = math.exp %55 : vector<4x8x8xf32>
    %cst_14 = arith.constant dense<0.000000e+00> : vector<4x8xf32>
    %57 = vector.multi_reduction <add>, %56, %cst_14 [2] : vector<4x8x8xf32> to vector<4x8xf32>
    %58 = vector.shape_cast %57 : vector<4x8xf32> to vector<4x8x1xf32>
    %59 = tpu.reciprocal %58 {approx = true} : vector<4x8x1xf32> -> vector<4x8x1xf32>
    %60 = vector.broadcast %59 : vector<4x8x1xf32> to vector<4x8x8xf32>
    %61 = arith.mulf %56, %60 : vector<4x8x8xf32>
    "tpu.trace_start"() <{level = 10 : i32, message = "hqk,hkd->hqd"}> : () -> ()
    %cst_15 = arith.constant dense<0.000000e+00> : vector<4x8x8xf32>
    %62 = tpu.matmul %61, %45, %cst_15 {dimension_numbers = #tpu.dot_dimension_numbers<[2], [1], [1], [2], [0, 0, 0, 1, 1, 2], [0], [0]>} : vector<4x8x8xf32>, vector<4x8x8xf32>, vector<4x8x8xf32> -> vector<4x8x8xf32>
    "tpu.trace_stop"() : () -> ()
    %63 = vector.extract_strided_slice %62 {offsets = [0, 0, 0], sizes = [1, 8, 8], strides = [1, 1, 1]} : vector<4x8x8xf32> to vector<1x8x8xf32>
    %64 = vector.shape_cast %63 : vector<1x8x8xf32> to vector<8x8xf32>
    %65 = vector.extract_strided_slice %62 {offsets = [1, 0, 0], sizes = [1, 8, 8], strides = [1, 1, 1]} : vector<4x8x8xf32> to vector<1x8x8xf32>
    %66 = vector.shape_cast %65 : vector<1x8x8xf32> to vector<8x8xf32>
    %67 = vector.extract_strided_slice %62 {offsets = [2, 0, 0], sizes = [1, 8, 8], strides = [1, 1, 1]} : vector<4x8x8xf32> to vector<1x8x8xf32>
    %68 = vector.shape_cast %67 : vector<1x8x8xf32> to vector<8x8xf32>
    %69 = vector.extract_strided_slice %62 {offsets = [3, 0, 0], sizes = [1, 8, 8], strides = [1, 1, 1]} : vector<4x8x8xf32> to vector<1x8x8xf32>
    %70 = vector.shape_cast %69 : vector<1x8x8xf32> to vector<8x8xf32>
    %71 = tpu.concatenate %64, %66, %68, %70 in 1 : vector<8x8xf32>, vector<8x8xf32>, vector<8x8xf32>, vector<8x8xf32> -> vector<8x32xf32>
    %c0_16 = arith.constant 0 : index
    %c0_17 = arith.constant 0 : index
    %c0_18 = arith.constant 0 : index
    %72 = vector.load %arg4[%c0_16, %c0_17, %c0_18] : memref<2x32x32xf32, #tpu.memory_space<vmem>>, vector<1x32x32xf32>
    %73 = vector.shape_cast %72 : vector<1x32x32xf32> to vector<32x32xf32>
    %cst_19 = arith.constant dense<0.000000e+00> : vector<8x32xf32>
    %74 = tpu.matmul %71, %73, %cst_19 {dimension_numbers = #tpu.dot_dimension_numbers<[1], [0], [0], [1], [0, 0, 1, 1], [], []>} : vector<8x32xf32>, vector<32x32xf32>, vector<8x32xf32> -> vector<8x32xf32>
    %c0_20 = arith.constant 0 : index
    %c0_21 = arith.constant 0 : index
    %c0_22 = arith.constant 0 : index
    %75 = vector.load %arg5[%c0_20, %c0_21, %c0_22] : memref<2x1x32xf32, #tpu.memory_space<vmem>>, vector<1x1x32xf32>
    %76 = vector.shape_cast %75 : vector<1x1x32xf32> to vector<1x32xf32>
    %77 = vector.broadcast %76 : vector<1x32xf32> to vector<8x32xf32>
    %78 = arith.addf %74, %77 : vector<8x32xf32>
    %79 = arith.addf %2, %78 : vector<8x32xf32>
    %c0_23 = arith.constant 0 : index
    %c0_24 = arith.constant 0 : index
    %c0_25 = arith.constant 0 : index
    %80 = vector.load %arg10[%c0_23, %c0_24, %c0_25] : memref<2x1x32xf32, #tpu.memory_space<vmem>>, vector<1x1x32xf32>
    %81 = vector.shape_cast %80 : vector<1x1x32xf32> to vector<1x32xf32>
    %c0_26 = arith.constant 0 : index
    %c0_27 = arith.constant 0 : index
    %c0_28 = arith.constant 0 : index
    %82 = vector.load %arg11[%c0_26, %c0_27, %c0_28] : memref<2x1x32xf32, #tpu.memory_space<vmem>>, vector<1x1x32xf32>
    %83 = vector.shape_cast %82 : vector<1x1x32xf32> to vector<1x32xf32>
    %cst_29 = arith.constant dense<0.000000e+00> : vector<8xf32>
    %84 = vector.multi_reduction <add>, %79, %cst_29 [1] : vector<8x32xf32> to vector<8xf32>
    %85 = vector.shape_cast %84 : vector<8xf32> to vector<8x1xf32>
    %cst_30 = arith.constant 3.200000e+01 : f32
    %86 = vector.broadcast %cst_30 : f32 to vector<8x1xf32>
    %87 = arith.divf %85, %86 : vector<8x1xf32>
    %88 = vector.broadcast %87 : vector<8x1xf32> to vector<8x32xf32>
    %89 = arith.subf %79, %88 : vector<8x32xf32>
    %90 = arith.mulf %89, %89 : vector<8x32xf32>
    %cst_31 = arith.constant dense<0.000000e+00> : vector<8xf32>
    %91 = vector.multi_reduction <add>, %90, %cst_31 [1] : vector<8x32xf32> to vector<8xf32>
    %92 = vector.shape_cast %91 : vector<8xf32> to vector<8x1xf32>
    %cst_32 = arith.constant 3.200000e+01 : f32
    %93 = vector.broadcast %cst_32 : f32 to vector<8x1xf32>
    %94 = arith.divf %92, %93 : vector<8x1xf32>
    %95 = vector.broadcast %87 : vector<8x1xf32> to vector<8x32xf32>
    %96 = arith.subf %79, %95 : vector<8x32xf32>
    %cst_33 = arith.constant 9.99999974E-6 : f32
    %97 = vector.broadcast %cst_33 : f32 to vector<8x1xf32>
    %98 = arith.addf %94, %97 : vector<8x1xf32>
    %99 = math.rsqrt %98 : vector<8x1xf32>
    %100 = vector.broadcast %99 : vector<8x1xf32> to vector<8x32xf32>
    %101 = arith.mulf %96, %100 : vector<8x32xf32>
    %102 = vector.broadcast %81 : vector<1x32xf32> to vector<8x32xf32>
    %103 = arith.mulf %101, %102 : vector<8x32xf32>
    %104 = vector.broadcast %83 : vector<1x32xf32> to vector<8x32xf32>
    %105 = arith.addf %103, %104 : vector<8x32xf32>
    %c0_34 = arith.constant 0 : index
    %c0_35 = arith.constant 0 : index
    %c0_36 = arith.constant 0 : index
    %106 = vector.load %arg6[%c0_34, %c0_35, %c0_36] : memref<2x32x64xf32, #tpu.memory_space<vmem>>, vector<1x32x64xf32>
    %107 = vector.shape_cast %106 : vector<1x32x64xf32> to vector<32x64xf32>
    %cst_37 = arith.constant dense<0.000000e+00> : vector<8x64xf32>
    %108 = tpu.matmul %105, %107, %cst_37 {dimension_numbers = #tpu.dot_dimension_numbers<[1], [0], [0], [1], [0, 0, 1, 1], [], []>} : vector<8x32xf32>, vector<32x64xf32>, vector<8x64xf32> -> vector<8x64xf32>
    %c0_38 = arith.constant 0 : index
    %c0_39 = arith.constant 0 : index
    %c0_40 = arith.constant 0 : index
    %109 = vector.load %arg7[%c0_38, %c0_39, %c0_40] : memref<2x1x64xf32, #tpu.memory_space<vmem>>, vector<1x1x64xf32>
    %110 = vector.shape_cast %109 : vector<1x1x64xf32> to vector<1x64xf32>
    %111 = vector.broadcast %110 : vector<1x64xf32> to vector<8x64xf32>
    %112 = arith.addf %108, %111 : vector<8x64xf32>
    %cst_41 = arith.constant 0.000000e+00 : f32
    %113 = vector.broadcast %cst_41 : f32 to vector<8x64xf32>
    %114 = arith.maximumf %112, %113 : vector<8x64xf32>
    %c0_42 = arith.constant 0 : index
    %c0_43 = arith.constant 0 : index
    %c0_44 = arith.constant 0 : index
    %115 = vector.load %arg8[%c0_42, %c0_43, %c0_44] : memref<2x64x32xf32, #tpu.memory_space<vmem>>, vector<1x64x32xf32>
    %116 = vector.shape_cast %115 : vector<1x64x32xf32> to vector<64x32xf32>
    %cst_45 = arith.constant dense<0.000000e+00> : vector<8x32xf32>
    %117 = tpu.matmul %114, %116, %cst_45 {dimension_numbers = #tpu.dot_dimension_numbers<[1], [0], [0], [1], [0, 0, 1, 1], [], []>} : vector<8x64xf32>, vector<64x32xf32>, vector<8x32xf32> -> vector<8x32xf32>
    %c0_46 = arith.constant 0 : index
    %c0_47 = arith.constant 0 : index
    %c0_48 = arith.constant 0 : index
    %118 = vector.load %arg9[%c0_46, %c0_47, %c0_48] : memref<2x1x32xf32, #tpu.memory_space<vmem>>, vector<1x1x32xf32>
    %119 = vector.shape_cast %118 : vector<1x1x32xf32> to vector<1x32xf32>
    %120 = vector.broadcast %119 : vector<1x32xf32> to vector<8x32xf32>
    %121 = arith.addf %117, %120 : vector<8x32xf32>
    %122 = arith.addf %105, %121 : vector<8x32xf32>
    %c0_49 = arith.constant 0 : index
    %c0_50 = arith.constant 0 : index
    %c0_51 = arith.constant 0 : index
    %123 = vector.load %arg12[%c0_49, %c0_50, %c0_51] : memref<2x1x32xf32, #tpu.memory_space<vmem>>, vector<1x1x32xf32>
    %124 = vector.shape_cast %123 : vector<1x1x32xf32> to vector<1x32xf32>
    %c0_52 = arith.constant 0 : index
    %c0_53 = arith.constant 0 : index
    %c0_54 = arith.constant 0 : index
    %125 = vector.load %arg13[%c0_52, %c0_53, %c0_54] : memref<2x1x32xf32, #tpu.memory_space<vmem>>, vector<1x1x32xf32>
    %126 = vector.shape_cast %125 : vector<1x1x32xf32> to vector<1x32xf32>
    %cst_55 = arith.constant dense<0.000000e+00> : vector<8xf32>
    %127 = vector.multi_reduction <add>, %122, %cst_55 [1] : vector<8x32xf32> to vector<8xf32>
    %128 = vector.shape_cast %127 : vector<8xf32> to vector<8x1xf32>
    %cst_56 = arith.constant 3.200000e+01 : f32
    %129 = vector.broadcast %cst_56 : f32 to vector<8x1xf32>
    %130 = arith.divf %128, %129 : vector<8x1xf32>
    %131 = vector.broadcast %130 : vector<8x1xf32> to vector<8x32xf32>
    %132 = arith.subf %122, %131 : vector<8x32xf32>
    %133 = arith.mulf %132, %132 : vector<8x32xf32>
    %cst_57 = arith.constant dense<0.000000e+00> : vector<8xf32>
    %134 = vector.multi_reduction <add>, %133, %cst_57 [1] : vector<8x32xf32> to vector<8xf32>
    %135 = vector.shape_cast %134 : vector<8xf32> to vector<8x1xf32>
    %cst_58 = arith.constant 3.200000e+01 : f32
    %136 = vector.broadcast %cst_58 : f32 to vector<8x1xf32>
    %137 = arith.divf %135, %136 : vector<8x1xf32>
    %138 = vector.broadcast %130 : vector<8x1xf32> to vector<8x32xf32>
    %139 = arith.subf %122, %138 : vector<8x32xf32>
    %cst_59 = arith.constant 9.99999974E-6 : f32
    %140 = vector.broadcast %cst_59 : f32 to vector<8x1xf32>
    %141 = arith.addf %137, %140 : vector<8x1xf32>
    %142 = math.rsqrt %141 : vector<8x1xf32>
    %143 = vector.broadcast %142 : vector<8x1xf32> to vector<8x32xf32>
    %144 = arith.mulf %139, %143 : vector<8x32xf32>
    %145 = vector.broadcast %124 : vector<1x32xf32> to vector<8x32xf32>
    %146 = arith.mulf %144, %145 : vector<8x32xf32>
    %147 = vector.broadcast %126 : vector<1x32xf32> to vector<8x32xf32>
    %148 = arith.addf %146, %147 : vector<8x32xf32>
    %c1 = arith.constant 1 : index
    %c0_60 = arith.constant 0 : index
    %c0_61 = arith.constant 0 : index
    %149 = vector.load %arg2[%c1, %c0_60, %c0_61] : memref<2x32x96xf32, #tpu.memory_space<vmem>>, vector<1x32x96xf32>
    %150 = vector.shape_cast %149 : vector<1x32x96xf32> to vector<32x96xf32>
    %cst_62 = arith.constant dense<0.000000e+00> : vector<8x96xf32>
    %151 = tpu.matmul %148, %150, %cst_62 {dimension_numbers = #tpu.dot_dimension_numbers<[1], [0], [0], [1], [0, 0, 1, 1], [], []>} : vector<8x32xf32>, vector<32x96xf32>, vector<8x96xf32> -> vector<8x96xf32>
    %c1_63 = arith.constant 1 : index
    %c0_64 = arith.constant 0 : index
    %c0_65 = arith.constant 0 : index
    %152 = vector.load %arg3[%c1_63, %c0_64, %c0_65] : memref<2x1x96xf32, #tpu.memory_space<vmem>>, vector<1x1x96xf32>
    %153 = vector.shape_cast %152 : vector<1x1x96xf32> to vector<1x96xf32>
    %154 = vector.broadcast %153 : vector<1x96xf32> to vector<8x96xf32>
    %155 = arith.addf %151, %154 : vector<8x96xf32>
    %156 = vector.extract_strided_slice %155 {offsets = [0, 0], sizes = [8, 32], strides = [1, 1]} : vector<8x96xf32> to vector<8x32xf32>
    %157 = vector.extract_strided_slice %155 {offsets = [0, 32], sizes = [8, 32], strides = [1, 1]} : vector<8x96xf32> to vector<8x32xf32>
    %158 = vector.extract_strided_slice %155 {offsets = [0, 64], sizes = [8, 32], strides = [1, 1]} : vector<8x96xf32> to vector<8x32xf32>
    %159 = vector.extract_strided_slice %156 {offsets = [0, 0], sizes = [8, 8], strides = [1, 1]} : vector<8x32xf32> to vector<8x8xf32>
    %160 = vector.extract_strided_slice %156 {offsets = [0, 8], sizes = [8, 8], strides = [1, 1]} : vector<8x32xf32> to vector<8x8xf32>
    %161 = vector.extract_strided_slice %156 {offsets = [0, 16], sizes = [8, 8], strides = [1, 1]} : vector<8x32xf32> to vector<8x8xf32>
    %162 = vector.extract_strided_slice %156 {offsets = [0, 24], sizes = [8, 8], strides = [1, 1]} : vector<8x32xf32> to vector<8x8xf32>
    %163 = vector.shape_cast %159 : vector<8x8xf32> to vector<1x8x8xf32>
    %164 = vector.shape_cast %160 : vector<8x8xf32> to vector<1x8x8xf32>
    %165 = vector.shape_cast %161 : vector<8x8xf32> to vector<1x8x8xf32>
    %166 = vector.shape_cast %162 : vector<8x8xf32> to vector<1x8x8xf32>
    %167 = tpu.concatenate %163, %164, %165, %166 in 0 : vector<1x8x8xf32>, vector<1x8x8xf32>, vector<1x8x8xf32>, vector<1x8x8xf32> -> vector<4x8x8xf32>
    %168 = vector.extract_strided_slice %157 {offsets = [0, 0], sizes = [8, 8], strides = [1, 1]} : vector<8x32xf32> to vector<8x8xf32>
    %169 = vector.extract_strided_slice %157 {offsets = [0, 8], sizes = [8, 8], strides = [1, 1]} : vector<8x32xf32> to vector<8x8xf32>
    %170 = vector.extract_strided_slice %157 {offsets = [0, 16], sizes = [8, 8], strides = [1, 1]} : vector<8x32xf32> to vector<8x8xf32>
    %171 = vector.extract_strided_slice %157 {offsets = [0, 24], sizes = [8, 8], strides = [1, 1]} : vector<8x32xf32> to vector<8x8xf32>
    %172 = vector.shape_cast %168 : vector<8x8xf32> to vector<1x8x8xf32>
    %173 = vector.shape_cast %169 : vector<8x8xf32> to vector<1x8x8xf32>
    %174 = vector.shape_cast %170 : vector<8x8xf32> to vector<1x8x8xf32>
    %175 = vector.shape_cast %171 : vector<8x8xf32> to vector<1x8x8xf32>
    %176 = tpu.concatenate %172, %173, %174, %175 in 0 : vector<1x8x8xf32>, vector<1x8x8xf32>, vector<1x8x8xf32>, vector<1x8x8xf32> -> vector<4x8x8xf32>
    %177 = vector.extract_strided_slice %158 {offsets = [0, 0], sizes = [8, 8], strides = [1, 1]} : vector<8x32xf32> to vector<8x8xf32>
    %178 = vector.extract_strided_slice %158 {offsets = [0, 8], sizes = [8, 8], strides = [1, 1]} : vector<8x32xf32> to vector<8x8xf32>
    %179 = vector.extract_strided_slice %158 {offsets = [0, 16], sizes = [8, 8], strides = [1, 1]} : vector<8x32xf32> to vector<8x8xf32>
    %180 = vector.extract_strided_slice %158 {offsets = [0, 24], sizes = [8, 8], strides = [1, 1]} : vector<8x32xf32> to vector<8x8xf32>
    %181 = vector.shape_cast %177 : vector<8x8xf32> to vector<1x8x8xf32>
    %182 = vector.shape_cast %178 : vector<8x8xf32> to vector<1x8x8xf32>
    %183 = vector.shape_cast %179 : vector<8x8xf32> to vector<1x8x8xf32>
    %184 = vector.shape_cast %180 : vector<8x8xf32> to vector<1x8x8xf32>
    %185 = tpu.concatenate %181, %182, %183, %184 in 0 : vector<1x8x8xf32>, vector<1x8x8xf32>, vector<1x8x8xf32>, vector<1x8x8xf32> -> vector<4x8x8xf32>
    %cst_66 = arith.constant 0.353553385 : f32
    %186 = vector.broadcast %cst_66 : f32 to vector<4x8x8xf32>
    %187 = arith.mulf %167, %186 : vector<4x8x8xf32>
    "tpu.trace_start"() <{level = 10 : i32, message = "hqd,hkd->hqk"}> : () -> ()
    %cst_67 = arith.constant dense<0.000000e+00> : vector<4x8x8xf32>
    %188 = tpu.matmul %187, %176, %cst_67 {dimension_numbers = #tpu.dot_dimension_numbers<[2], [2], [1], [1], [0, 0, 0, 1, 1, 1], [0], [0]>} : vector<4x8x8xf32>, vector<4x8x8xf32>, vector<4x8x8xf32> -> vector<4x8x8xf32>
    "tpu.trace_stop"() : () -> ()
    %189 = vector.shape_cast %8 : vector<8x8xf32> to vector<1x8x8xf32>
    %190 = vector.broadcast %189 : vector<1x8x8xf32> to vector<4x8x8xf32>
    %191 = arith.addf %188, %190 : vector<4x8x8xf32>
    %cst_68 = arith.constant dense<0xFF800000> : vector<4x8xf32>
    %192 = vector.multi_reduction <maximumf>, %191, %cst_68 [2] : vector<4x8x8xf32> to vector<4x8xf32>
    %193 = vector.shape_cast %192 : vector<4x8xf32> to vector<4x8x1xf32>
    %194 = vector.broadcast %193 : vector<4x8x1xf32> to vector<4x8x8xf32>
    %195 = arith.subf %191, %194 : vector<4x8x8xf32>
    %196 = math.exp %195 : vector<4x8x8xf32>
    %cst_69 = arith.constant dense<0.000000e+00> : vector<4x8xf32>
    %197 = vector.multi_reduction <add>, %196, %cst_69 [2] : vector<4x8x8xf32> to vector<4x8xf32>
    %198 = vector.shape_cast %197 : vector<4x8xf32> to vector<4x8x1xf32>
    %199 = tpu.reciprocal %198 {approx = true} : vector<4x8x1xf32> -> vector<4x8x1xf32>
    %200 = vector.broadcast %199 : vector<4x8x1xf32> to vector<4x8x8xf32>
    %201 = arith.mulf %196, %200 : vector<4x8x8xf32>
    "tpu.trace_start"() <{level = 10 : i32, message = "hqk,hkd->hqd"}> : () -> ()
    %cst_70 = arith.constant dense<0.000000e+00> : vector<4x8x8xf32>
    %202 = tpu.matmul %201, %185, %cst_70 {dimension_numbers = #tpu.dot_dimension_numbers<[2], [1], [1], [2], [0, 0, 0, 1, 1, 2], [0], [0]>} : vector<4x8x8xf32>, vector<4x8x8xf32>, vector<4x8x8xf32> -> vector<4x8x8xf32>
    "tpu.trace_stop"() : () -> ()
    %203 = vector.extract_strided_slice %202 {offsets = [0, 0, 0], sizes = [1, 8, 8], strides = [1, 1, 1]} : vector<4x8x8xf32> to vector<1x8x8xf32>
    %204 = vector.shape_cast %203 : vector<1x8x8xf32> to vector<8x8xf32>
    %205 = vector.extract_strided_slice %202 {offsets = [1, 0, 0], sizes = [1, 8, 8], strides = [1, 1, 1]} : vector<4x8x8xf32> to vector<1x8x8xf32>
    %206 = vector.shape_cast %205 : vector<1x8x8xf32> to vector<8x8xf32>
    %207 = vector.extract_strided_slice %202 {offsets = [2, 0, 0], sizes = [1, 8, 8], strides = [1, 1, 1]} : vector<4x8x8xf32> to vector<1x8x8xf32>
    %208 = vector.shape_cast %207 : vector<1x8x8xf32> to vector<8x8xf32>
    %209 = vector.extract_strided_slice %202 {offsets = [3, 0, 0], sizes = [1, 8, 8], strides = [1, 1, 1]} : vector<4x8x8xf32> to vector<1x8x8xf32>
    %210 = vector.shape_cast %209 : vector<1x8x8xf32> to vector<8x8xf32>
    %211 = tpu.concatenate %204, %206, %208, %210 in 1 : vector<8x8xf32>, vector<8x8xf32>, vector<8x8xf32>, vector<8x8xf32> -> vector<8x32xf32>
    %c1_71 = arith.constant 1 : index
    %c0_72 = arith.constant 0 : index
    %c0_73 = arith.constant 0 : index
    %212 = vector.load %arg4[%c1_71, %c0_72, %c0_73] : memref<2x32x32xf32, #tpu.memory_space<vmem>>, vector<1x32x32xf32>
    %213 = vector.shape_cast %212 : vector<1x32x32xf32> to vector<32x32xf32>
    %cst_74 = arith.constant dense<0.000000e+00> : vector<8x32xf32>
    %214 = tpu.matmul %211, %213, %cst_74 {dimension_numbers = #tpu.dot_dimension_numbers<[1], [0], [0], [1], [0, 0, 1, 1], [], []>} : vector<8x32xf32>, vector<32x32xf32>, vector<8x32xf32> -> vector<8x32xf32>
    %c1_75 = arith.constant 1 : index
    %c0_76 = arith.constant 0 : index
    %c0_77 = arith.constant 0 : index
    %215 = vector.load %arg5[%c1_75, %c0_76, %c0_77] : memref<2x1x32xf32, #tpu.memory_space<vmem>>, vector<1x1x32xf32>
    %216 = vector.shape_cast %215 : vector<1x1x32xf32> to vector<1x32xf32>
    %217 = vector.broadcast %216 : vector<1x32xf32> to vector<8x32xf32>
    %218 = arith.addf %214, %217 : vector<8x32xf32>
    %219 = arith.addf %148, %218 : vector<8x32xf32>
    %c1_78 = arith.constant 1 : index
    %c0_79 = arith.constant 0 : index
    %c0_80 = arith.constant 0 : index
    %220 = vector.load %arg10[%c1_78, %c0_79, %c0_80] : memref<2x1x32xf32, #tpu.memory_space<vmem>>, vector<1x1x32xf32>
    %221 = vector.shape_cast %220 : vector<1x1x32xf32> to vector<1x32xf32>
    %c1_81 = arith.constant 1 : index
    %c0_82 = arith.constant 0 : index
    %c0_83 = arith.constant 0 : index
    %222 = vector.load %arg11[%c1_81, %c0_82, %c0_83] : memref<2x1x32xf32, #tpu.memory_space<vmem>>, vector<1x1x32xf32>
    %223 = vector.shape_cast %222 : vector<1x1x32xf32> to vector<1x32xf32>
    %cst_84 = arith.constant dense<0.000000e+00> : vector<8xf32>
    %224 = vector.multi_reduction <add>, %219, %cst_84 [1] : vector<8x32xf32> to vector<8xf32>
    %225 = vector.shape_cast %224 : vector<8xf32> to vector<8x1xf32>
    %cst_85 = arith.constant 3.200000e+01 : f32
    %226 = vector.broadcast %cst_85 : f32 to vector<8x1xf32>
    %227 = arith.divf %225, %226 : vector<8x1xf32>
    %228 = vector.broadcast %227 : vector<8x1xf32> to vector<8x32xf32>
    %229 = arith.subf %219, %228 : vector<8x32xf32>
    %230 = arith.mulf %229, %229 : vector<8x32xf32>
    %cst_86 = arith.constant dense<0.000000e+00> : vector<8xf32>
    %231 = vector.multi_reduction <add>, %230, %cst_86 [1] : vector<8x32xf32> to vector<8xf32>
    %232 = vector.shape_cast %231 : vector<8xf32> to vector<8x1xf32>
    %cst_87 = arith.constant 3.200000e+01 : f32
    %233 = vector.broadcast %cst_87 : f32 to vector<8x1xf32>
    %234 = arith.divf %232, %233 : vector<8x1xf32>
    %235 = vector.broadcast %227 : vector<8x1xf32> to vector<8x32xf32>
    %236 = arith.subf %219, %235 : vector<8x32xf32>
    %cst_88 = arith.constant 9.99999974E-6 : f32
    %237 = vector.broadcast %cst_88 : f32 to vector<8x1xf32>
    %238 = arith.addf %234, %237 : vector<8x1xf32>
    %239 = math.rsqrt %238 : vector<8x1xf32>
    %240 = vector.broadcast %239 : vector<8x1xf32> to vector<8x32xf32>
    %241 = arith.mulf %236, %240 : vector<8x32xf32>
    %242 = vector.broadcast %221 : vector<1x32xf32> to vector<8x32xf32>
    %243 = arith.mulf %241, %242 : vector<8x32xf32>
    %244 = vector.broadcast %223 : vector<1x32xf32> to vector<8x32xf32>
    %245 = arith.addf %243, %244 : vector<8x32xf32>
    %c1_89 = arith.constant 1 : index
    %c0_90 = arith.constant 0 : index
    %c0_91 = arith.constant 0 : index
    %246 = vector.load %arg6[%c1_89, %c0_90, %c0_91] : memref<2x32x64xf32, #tpu.memory_space<vmem>>, vector<1x32x64xf32>
    %247 = vector.shape_cast %246 : vector<1x32x64xf32> to vector<32x64xf32>
    %cst_92 = arith.constant dense<0.000000e+00> : vector<8x64xf32>
    %248 = tpu.matmul %245, %247, %cst_92 {dimension_numbers = #tpu.dot_dimension_numbers<[1], [0], [0], [1], [0, 0, 1, 1], [], []>} : vector<8x32xf32>, vector<32x64xf32>, vector<8x64xf32> -> vector<8x64xf32>
    %c1_93 = arith.constant 1 : index
    %c0_94 = arith.constant 0 : index
    %c0_95 = arith.constant 0 : index
    %249 = vector.load %arg7[%c1_93, %c0_94, %c0_95] : memref<2x1x64xf32, #tpu.memory_space<vmem>>, vector<1x1x64xf32>
    %250 = vector.shape_cast %249 : vector<1x1x64xf32> to vector<1x64xf32>
    %251 = vector.broadcast %250 : vector<1x64xf32> to vector<8x64xf32>
    %252 = arith.addf %248, %251 : vector<8x64xf32>
    %cst_96 = arith.constant 0.000000e+00 : f32
    %253 = vector.broadcast %cst_96 : f32 to vector<8x64xf32>
    %254 = arith.maximumf %252, %253 : vector<8x64xf32>
    %c1_97 = arith.constant 1 : index
    %c0_98 = arith.constant 0 : index
    %c0_99 = arith.constant 0 : index
    %255 = vector.load %arg8[%c1_97, %c0_98, %c0_99] : memref<2x64x32xf32, #tpu.memory_space<vmem>>, vector<1x64x32xf32>
    %256 = vector.shape_cast %255 : vector<1x64x32xf32> to vector<64x32xf32>
    %cst_100 = arith.constant dense<0.000000e+00> : vector<8x32xf32>
    %257 = tpu.matmul %254, %256, %cst_100 {dimension_numbers = #tpu.dot_dimension_numbers<[1], [0], [0], [1], [0, 0, 1, 1], [], []>} : vector<8x64xf32>, vector<64x32xf32>, vector<8x32xf32> -> vector<8x32xf32>
    %c1_101 = arith.constant 1 : index
    %c0_102 = arith.constant 0 : index
    %c0_103 = arith.constant 0 : index
    %258 = vector.load %arg9[%c1_101, %c0_102, %c0_103] : memref<2x1x32xf32, #tpu.memory_space<vmem>>, vector<1x1x32xf32>
    %259 = vector.shape_cast %258 : vector<1x1x32xf32> to vector<1x32xf32>
    %260 = vector.broadcast %259 : vector<1x32xf32> to vector<8x32xf32>
    %261 = arith.addf %257, %260 : vector<8x32xf32>
    %262 = arith.addf %245, %261 : vector<8x32xf32>
    %c1_104 = arith.constant 1 : index
    %c0_105 = arith.constant 0 : index
    %c0_106 = arith.constant 0 : index
    %263 = vector.load %arg12[%c1_104, %c0_105, %c0_106] : memref<2x1x32xf32, #tpu.memory_space<vmem>>, vector<1x1x32xf32>
    %264 = vector.shape_cast %263 : vector<1x1x32xf32> to vector<1x32xf32>
    %c1_107 = arith.constant 1 : index
    %c0_108 = arith.constant 0 : index
    %c0_109 = arith.constant 0 : index
    %265 = vector.load %arg13[%c1_107, %c0_108, %c0_109] : memref<2x1x32xf32, #tpu.memory_space<vmem>>, vector<1x1x32xf32>
    %266 = vector.shape_cast %265 : vector<1x1x32xf32> to vector<1x32xf32>
    %cst_110 = arith.constant dense<0.000000e+00> : vector<8xf32>
    %267 = vector.multi_reduction <add>, %262, %cst_110 [1] : vector<8x32xf32> to vector<8xf32>
    %268 = vector.shape_cast %267 : vector<8xf32> to vector<8x1xf32>
    %cst_111 = arith.constant 3.200000e+01 : f32
    %269 = vector.broadcast %cst_111 : f32 to vector<8x1xf32>
    %270 = arith.divf %268, %269 : vector<8x1xf32>
    %271 = vector.broadcast %270 : vector<8x1xf32> to vector<8x32xf32>
    %272 = arith.subf %262, %271 : vector<8x32xf32>
    %273 = arith.mulf %272, %272 : vector<8x32xf32>
    %cst_112 = arith.constant dense<0.000000e+00> : vector<8xf32>
    %274 = vector.multi_reduction <add>, %273, %cst_112 [1] : vector<8x32xf32> to vector<8xf32>
    %275 = vector.shape_cast %274 : vector<8xf32> to vector<8x1xf32>
    %cst_113 = arith.constant 3.200000e+01 : f32
    %276 = vector.broadcast %cst_113 : f32 to vector<8x1xf32>
    %277 = arith.divf %275, %276 : vector<8x1xf32>
    %278 = vector.broadcast %270 : vector<8x1xf32> to vector<8x32xf32>
    %279 = arith.subf %262, %278 : vector<8x32xf32>
    %cst_114 = arith.constant 9.99999974E-6 : f32
    %280 = vector.broadcast %cst_114 : f32 to vector<8x1xf32>
    %281 = arith.addf %277, %280 : vector<8x1xf32>
    %282 = math.rsqrt %281 : vector<8x1xf32>
    %283 = vector.broadcast %282 : vector<8x1xf32> to vector<8x32xf32>
    %284 = arith.mulf %279, %283 : vector<8x32xf32>
    %285 = vector.broadcast %264 : vector<1x32xf32> to vector<8x32xf32>
    %286 = arith.mulf %284, %285 : vector<8x32xf32>
    %287 = vector.broadcast %266 : vector<1x32xf32> to vector<8x32xf32>
    %288 = arith.addf %286, %287 : vector<8x32xf32>
    %c0_115 = arith.constant 0 : index
    %c0_116 = arith.constant 0 : index
    %289 = vector.load %arg14[%c0_115, %c0_116] : memref<32x16xf32, #tpu.memory_space<vmem>>, vector<32x16xf32>
    %cst_117 = arith.constant dense<0.000000e+00> : vector<8x16xf32>
    %290 = tpu.matmul %288, %289, %cst_117 {dimension_numbers = #tpu.dot_dimension_numbers<[1], [0], [0], [1], [0, 0, 1, 1], [], []>} : vector<8x32xf32>, vector<32x16xf32>, vector<8x16xf32> -> vector<8x16xf32>
    %c0_118 = arith.constant 0 : index
    %c0_119 = arith.constant 0 : index
    %291 = vector.load %arg15[%c0_118, %c0_119] : memref<1x16xf32, #tpu.memory_space<vmem>>, vector<1x16xf32>
    %292 = vector.broadcast %291 : vector<1x16xf32> to vector<8x16xf32>
    %293 = arith.addf %290, %292 : vector<8x16xf32>
    %c0_120 = arith.constant 0 : index
    %c0_121 = arith.constant 0 : index
    %294 = vector.load %arg16[%c0_120, %c0_121] : memref<8x16xf32, #tpu.memory_space<vmem>>, vector<8x16xf32>
    tpu.vector_store %arg16[%c0_120, %c0_121], %293 {strides = array<i32>} : memref<8x16xf32, #tpu.memory_space<vmem>>, vector<8x16xf32>,
    return
  }
}

</mosaic_0001>

<llo_original>
// kernel: tpu_custom_call.1
$region0: #{tpu_custom_call.1}
  #allocation0 [shape = 'u32[]', space=smem, size = 0x4, offset = 0x4, fixed_abs, tag = 'smem constant byte address 0x4 - core index']
  #allocation1 [shape = 'u32[144,128]{1,0:T(1,128)}', space=vmem, size = 0x12000, scoped, tag = 'internal scratch']
  %s0 = inlined_call_operand.vmem [shape: f32[8,32], index: 0, kind: input, shape index: {}]
  %s1 = inlined_call_operand.vmem [shape: f32[400,32], index: 1, kind: input, shape index: {}]
  %s2 = inlined_call_operand.vmem [shape: f32[2,32,96], index: 2, kind: input, shape index: {}]
  %s3 = inlined_call_operand.vmem [shape: f32[2,1,96], index: 3, kind: input, shape index: {}]
  %s4 = inlined_call_operand.vmem [shape: f32[2,32,32], index: 4, kind: input, shape index: {}]
  %s5 = inlined_call_operand.vmem [shape: f32[2,1,32], index: 5, kind: input, shape index: {}]
  %s6 = inlined_call_operand.vmem [shape: f32[2,32,64], index: 6, kind: input, shape index: {}]
  %s7 = inlined_call_operand.vmem [shape: f32[2,1,64], index: 7, kind: input, shape index: {}]
  %s8 = inlined_call_operand.vmem [shape: f32[2,64,32], index: 8, kind: input, shape index: {}]
  %s9 = inlined_call_operand.vmem [shape: f32[2,1,32], index: 9, kind: input, shape index: {}]
  %s10 = inlined_call_operand.vmem [shape: f32[2,1,32], index: 10, kind: input, shape index: {}]
  %s11 = inlined_call_operand.vmem [shape: f32[2,1,32], index: 11, kind: input, shape index: {}]
  %s12 = inlined_call_operand.vmem [shape: f32[2,1,32], index: 12, kind: input, shape index: {}]
  %s13 = inlined_call_operand.vmem [shape: f32[2,1,32], index: 13, kind: input, shape index: {}]
  %s14 = inlined_call_operand.vmem [shape: f32[32,16], index: 14, kind: input, shape index: {}]
  %s15 = inlined_call_operand.vmem [shape: f32[1,16], index: 15, kind: input, shape index: {}]
  %s16 = inlined_call_operand.hbm [shape: f32[8,16], index: 16, kind: output, shape index: {}]
  %s17 = sld [smem:[#allocation0]]
  $region74: #{tpu_custom_call.1} parent=0
    _
  %s19 = ssub.s32 1, %s17
  %s20 = scalar_select 0, %s19, %s17
  $region1: #{tpu_custom_call.1} parent=0
    #allocation2 [shape = 'u8[4096]{0}', space=vmem, size = 0x1000, scoped, tag = 'output window, operand 0, single buffered']
    #allocation3 [shape = 's32[1]{0}', space=sflag, size = 0x4, scoped, tag = 'scoped memory for tpu_custom_call.1']
    %21 = vsyncpa [#allocation3], 0
    // Predicated region
    $region2: #{tpu_custom_call.1} parent=1 // pred_check
      _
    $region3: #{tpu_custom_call.1} parent=1 // pred_check_branch
      %23 = sbr.rel (0) target = $region5
    $region4: #{tpu_custom_call.1} parent=1 // pred_region
      _
    $region5: #{tpu_custom_call.1} parent=1 // pred_fallthru
      _
    // Predicated region
    $region6: #{tpu_custom_call.1} parent=1 // pred_check
      _
    $region7: #{tpu_custom_call.1} parent=1 // pred_check_branch
      %25 = sbr.rel (0) target = $region9
    $region8: #{tpu_custom_call.1} parent=1 // pred_region
      _
    $region9: #{tpu_custom_call.1} parent=1 // pred_fallthru
      _
    // Predicated region
    $region10: #{tpu_custom_call.1} parent=1 // pred_check
      _
    $region11: #{tpu_custom_call.1} parent=1 // pred_check_branch
      %27 = sbr.rel (0) target = $region13
    $region12: #{tpu_custom_call.1} parent=1 // pred_region
      _
    $region13: #{tpu_custom_call.1} parent=1 // pred_fallthru
      _
    // Predicated region
    $region14: #{tpu_custom_call.1} parent=1 // pred_check
      _
    $region15: #{tpu_custom_call.1} parent=1 // pred_check_branch
      %29 = sbr.rel (0) target = $region17
    $region16: #{tpu_custom_call.1} parent=1 // pred_region
      _
    $region17: #{tpu_custom_call.1} parent=1 // pred_fallthru
      _
    // Predicated region
    $region18: #{tpu_custom_call.1} parent=1 // pred_check
      _
    $region19: #{tpu_custom_call.1} parent=1 // pred_check_branch
      %31 = sbr.rel (0) target = $region21
    $region20: #{tpu_custom_call.1} parent=1 // pred_region
      _
    $region21: #{tpu_custom_call.1} parent=1 // pred_fallthru
      _
    // Predicated region
    $region22: #{tpu_custom_call.1} parent=1 // pred_check
      _
    $region23: #{tpu_custom_call.1} parent=1 // pred_check_branch
      %33 = sbr.rel (0) target = $region25
    $region24: #{tpu_custom_call.1} parent=1 // pred_region
      _
    $region25: #{tpu_custom_call.1} parent=1 // pred_fallthru
      _
    // Predicated region
    $region26: #{tpu_custom_call.1} parent=1 // pred_check
      _
    $region27: #{tpu_custom_call.1} parent=1 // pred_check_branch
      %35 = sbr.rel (0) target = $region29
    $region28: #{tpu_custom_call.1} parent=1 // pred_region
      _
    $region29: #{tpu_custom_call.1} parent=1 // pred_fallthru
      _
    // Predicated region
    $region30: #{tpu_custom_call.1} parent=1 // pred_check
      _
    $region31: #{tpu_custom_call.1} parent=1 // pred_check_branch
      %37 = sbr.rel (0) target = $region33
    $region32: #{tpu_custom_call.1} parent=1 // pred_region
      _
    $region33: #{tpu_custom_call.1} parent=1 // pred_fallthru
      _
    // Predicated region
    $region34: #{tpu_custom_call.1} parent=1 // pred_check
      _
    $region35: #{tpu_custom_call.1} parent=1 // pred_check_branch
      %39 = sbr.rel (0) target = $region37
    $region36: #{tpu_custom_call.1} parent=1 // pred_region
      _
    $region37: #{tpu_custom_call.1} parent=1 // pred_fallthru
      _
    // Predicated region
    $region38: #{tpu_custom_call.1} parent=1 // pred_check
      _
    $region39: #{tpu_custom_call.1} parent=1 // pred_check_branch
      %41 = sbr.rel (0) target = $region41
    $region40: #{tpu_custom_call.1} parent=1 // pred_region
      _
    $region41: #{tpu_custom_call.1} parent=1 // pred_fallthru
      _
    // Predicated region
    $region42: #{tpu_custom_call.1} parent=1 // pred_check
      _
    $region43: #{tpu_custom_call.1} parent=1 // pred_check_branch
      %43 = sbr.rel (0) target = $region45
    $region44: #{tpu_custom_call.1} parent=1 // pred_region
      _
    $region45: #{tpu_custom_call.1} parent=1 // pred_fallthru
      _
    // Predicated region
    $region46: #{tpu_custom_call.1} parent=1 // pred_check
      _
    $region47: #{tpu_custom_call.1} parent=1 // pred_check_branch
      %45 = sbr.rel (0) target = $region49
    $region48: #{tpu_custom_call.1} parent=1 // pred_region
      _
    $region49: #{tpu_custom_call.1} parent=1 // pred_fallthru
      _
    // Predicated region
    $region50: #{tpu_custom_call.1} parent=1 // pred_check
      _
    $region51: #{tpu_custom_call.1} parent=1 // pred_check_branch
      %47 = sbr.rel (0) target = $region53
    $region52: #{tpu_custom_call.1} parent=1 // pred_region
      _
    $region53: #{tpu_custom_call.1} parent=1 // pred_fallthru
      _
    // Predicated region
    $region54: #{tpu_custom_call.1} parent=1 // pred_check
      _
    $region55: #{tpu_custom_call.1} parent=1 // pred_check_branch
      %49 = sbr.rel (0) target = $region57
    $region56: #{tpu_custom_call.1} parent=1 // pred_region
      _
    $region57: #{tpu_custom_call.1} parent=1 // pred_fallthru
      _
    // Predicated region
    $region58: #{tpu_custom_call.1} parent=1 // pred_check
      _
    $region59: #{tpu_custom_call.1} parent=1 // pred_check_branch
      %51 = sbr.rel (0) target = $region61
    $region60: #{tpu_custom_call.1} parent=1 // pred_region
      _
    $region61: #{tpu_custom_call.1} parent=1 // pred_fallthru
      _
    // Predicated region
    $region62: #{tpu_custom_call.1} parent=1 // pred_check
      _
    $region63: #{tpu_custom_call.1} parent=1 // pred_check_branch
      %53 = sbr.rel (0) target = $region65
    $region64: #{tpu_custom_call.1} parent=1 // pred_region
      _
    $region65: #{tpu_custom_call.1} parent=1 // pred_fallthru
      _
    %v54 = vld [vmem:[%s0] sm:$0xff]
    %v55 = vld [vmem:[%s1] sm:$0xff]
    %v56 = vadd.f32 %v54, %v55
    %v57 = vlaneseq
    %v58 = vshrl.u32 %v57, 7
    %v59 = vlaneseq
    %v60 = vand.u32 %v59, 127
    %vm61 = vcmp.le.s32.totalorder %v60, %v58
    %v62 = vsel %vm61, 0.0, -inf
    %v63 = vld [vmem:[%s2] sm:$0xff]
    %v64 = vld [vmem:[%s2 + $0x8] sm:$0xff]
    %v65 = vld [vmem:[%s2 + $0x10] sm:$0xff]
    %v66 = vld [vmem:[%s2 + $0x18] sm:$0xff]
    %v67 = vld [vmem:[%s3] sm:$0x1]
    %v69 = vlaneseq
    %v70 = vshrl.u32 %v69, 7
    %v71 = vsub.s32 0, %v70
    %v72 = vrot.slane %v67, %v71
    %vm74 = vcmask 261120
    %v76 = vsel %vm74, %v56, 0
    %78 = vmatprep.subr.mxu0 0.0
    %79 = vmatpush1.msra.mxu0 0.0
    %80 = vmatprep.subr.mxu0 0.0
    %81 = vmatpush1.msra.mxu0 0.0
    %82 = vmatprep.subr.mxu0 0.0
    %83 = vmatpush1.msra.mxu0 0.0
    %84 = vmatprep.subr.mxu0 0.0
    %85 = vmatpush1.msra.mxu0 0.0
    %86 = vmatprep.subr.mxu0 0.0
    %87 = vmatpush1.msra.mxu0 0.0
    %88 = vmatprep.subr.mxu0 0.0
    %89 = vmatpush1.msra.mxu0 0.0
    %90 = vmatprep.subr.mxu0 0.0
    %91 = vmatpush1.msra.mxu0 0.0
    %92 = vmatprep.subr.mxu0 0.0
    %93 = vmatpush1.msra.mxu0 0.0
    %94 = vmatprep.subr.mxu0 0.0
    %95 = vmatpush1.msra.mxu0 0.0
    %96 = vmatprep.subr.mxu0 0.0
    %97 = vmatpush1.msra.mxu0 0.0
    %98 = vmatprep.subr.mxu0 0.0
    %99 = vmatpush1.msra.mxu0 0.0
    %100 = vmatprep.subr.mxu0 0.0
    %101 = vmatpush1.msra.mxu0 0.0
    %102 = vmatprep.subr.mxu0 0.0
    %103 = vmatpush1.msra.mxu0 %v66
    %104 = vmatprep.subr.mxu0 0.0
    %105 = vmatpush1.msra.mxu0 %v65
    %106 = vmatprep.subr.mxu0 0.0
    %107 = vmatpush1.msra.mxu0 %v64
    %108 = vmatprep.subr.mxu0 0.0
    %109 = vmatpush1.msra.mxu0 %v63
    %110 = vmatprep.subr.mxu0 0.0
    %111 = vmatpush2.msra.mxu0 0.0
    %112 = vmatprep.subr.mxu0 0.0
    %113 = vmatpush2.msra.mxu0 0.0
    %114 = vmatprep.subr.mxu0 0.0
    %115 = vmatpush2.msra.mxu0 0.0
    %116 = vmatprep.subr.mxu0 0.0
    %117 = vmatpush2.msra.mxu0 0.0
    %118 = vmatprep.subr.mxu0 0.0
    %119 = vmatpush2.msra.mxu0 0.0
    %120 = vmatprep.subr.mxu0 0.0
    %121 = vmatpush2.msra.mxu0 0.0
    %122 = vmatprep.subr.mxu0 0.0
    %123 = vmatpush2.msra.mxu0 0.0
    %124 = vmatprep.subr.mxu0 0.0
    %125 = vmatpush2.msra.mxu0 0.0
    %126 = vmatprep.subr.mxu0 0.0
    %127 = vmatpush2.msra.mxu0 0.0
    %128 = vmatprep.subr.mxu0 0.0
    %129 = vmatpush2.msra.mxu0 0.0
    %130 = vmatprep.subr.mxu0 0.0
    %131 = vmatpush2.msra.mxu0 0.0
    %132 = vmatprep.subr.mxu0 0.0
    %133 = vmatpush2.msra.mxu0 0.0
    %134 = vmatprep.subr.mxu0 0.0
    %135 = vmatpush2.msra.mxu0 0.0
    %136 = vmatprep.subr.mxu0 0.0
    %137 = vmatpush2.msra.mxu0 0.0
    %138 = vmatprep.subr.mxu0 0.0
    %139 = vmatpush2.msra.mxu0 0.0
    %140 = vmatprep.subr.mxu0 0.0
    %141 = vmatpush2.msra.mxu0 0.0
    %142 = vmatprep.mubr.f32.mxu0 0.0
    %143 = vmatmul.mubr.f32.gmra.mxu0 %v76
    %v144 = vpop.f32.mrf.mxu0
    %v145 = vadd.f32 %v72, %v144
    %v146 = vpop.f32.mrf.mxu0
    %147 = vdwg.mxu0
    %149 = vrot.lane.b32.xlu0 %v145, 120
    %v150 = vpop.permute.xlu0 %149
    %152 = vrot.lane.b32.xlu0 %v145, 112
    %v153 = vpop.permute.xlu0 %152
    %155 = vrot.lane.b32.xlu0 %v145, 104
    %v156 = vpop.permute.xlu0 %155
    %v158 = vmul.f32 %v145, 0.35355338
    %v159 = vmul.f32 %v150, 0.35355338
    %v160 = vmul.f32 %v153, 0.35355338
    %v161 = vmul.f32 %v156, 0.35355338
    %162 = vrot.lane.b32.xlu0 %v145, 96
    %v163 = vpop.permute.xlu0 %162
    %vm164 = vcmask 64512
    %v166 = vsel %vm164, %v158, 0
    %v168 = vsel %vm164, %v163, 0
    %170 = vmatprep.subr.mxu0 0.0
    %171 = vmatpush1.xpose.msra.mxu0 0.0
    %172 = vmatprep.subr.mxu0 0.0
    %173 = vmatpush1.xpose.msra.mxu0 0.0
    %174 = vmatprep.subr.mxu0 0.0
    %175 = vmatpush1.xpose.msra.mxu0 0.0
    %176 = vmatprep.subr.mxu0 0.0
    %177 = vmatpush1.xpose.msra.mxu0 0.0
    %178 = vmatprep.subr.mxu0 0.0
    %179 = vmatpush1.xpose.msra.mxu0 0.0
    %180 = vmatprep.subr.mxu0 0.0
    %181 = vmatpush1.xpose.msra.mxu0 0.0
    %182 = vmatprep.subr.mxu0 0.0
    %183 = vmatpush1.xpose.msra.mxu0 0.0
    %184 = vmatprep.subr.mxu0 0.0
    %185 = vmatpush1.xpose.msra.mxu0 0.0
    %186 = vmatprep.subr.mxu0 0.0
    %187 = vmatpush1.xpose.msra.mxu0 0.0
    %188 = vmatprep.subr.mxu0 0.0
    %189 = vmatpush1.xpose.msra.mxu0 0.0
    %190 = vmatprep.subr.mxu0 0.0
    %191 = vmatpush1.xpose.msra.mxu0 0.0
    %192 = vmatprep.subr.mxu0 0.0
    %193 = vmatpush1.xpose.msra.mxu0 0.0
    %194 = vmatprep.subr.mxu0 0.0
    %195 = vmatpush1.xpose.msra.mxu0 0.0
    %196 = vmatprep.subr.mxu0 0.0
    %197 = vmatpush1.xpose.msra.mxu0 0.0
    %198 = vmatprep.subr.mxu0 0.0
    %199 = vmatpush1.xpose.msra.mxu0 0.0
    %200 = vmatprep.subr.mxu0 0.0
    %201 = vmatpush1.xpose.msra.mxu0 %v168
    %202 = vmatprep.subr.mxu0 0.0
    %203 = vmatpush2.xpose.msra.mxu0 0.0
    %204 = vmatprep.subr.mxu0 0.0
    %205 = vmatpush2.xpose.msra.mxu0 0.0
    %206 = vmatprep.subr.mxu0 0.0
    %207 = vmatpush2.xpose.msra.mxu0 0.0
    %208 = vmatprep.subr.mxu0 0.0
    %209 = vmatpush2.xpose.msra.mxu0 0.0
    %210 = vmatprep.subr.mxu0 0.0
    %211 = vmatpush2.xpose.msra.mxu0 0.0
    %212 = vmatprep.subr.mxu0 0.0
    %213 = vmatpush2.xpose.msra.mxu0 0.0
    %214 = vmatprep.subr.mxu0 0.0
    %215 = vmatpush2.xpose.msra.mxu0 0.0
    %216 = vmatprep.subr.mxu0 0.0
    %217 = vmatpush2.xpose.msra.mxu0 0.0
    %218 = vmatprep.subr.mxu0 0.0
    %219 = vmatpush2.xpose.msra.mxu0 0.0
    %220 = vmatprep.subr.mxu0 0.0
    %221 = vmatpush2.xpose.msra.mxu0 0.0
    %222 = vmatprep.subr.mxu0 0.0
    %223 = vmatpush2.xpose.msra.mxu0 0.0
    %224 = vmatprep.subr.mxu0 0.0
    %225 = vmatpush2.xpose.msra.mxu0 0.0
    %226 = vmatprep.subr.mxu0 0.0
    %227 = vmatpush2.xpose.msra.mxu0 0.0
    %228 = vmatprep.subr.mxu0 0.0
    %229 = vmatpush2.xpose.msra.mxu0 0.0
    %230 = vmatprep.subr.mxu0 0.0
    %231 = vmatpush2.xpose.msra.mxu0 0.0
    %232 = vmatprep.subr.mxu0 0.0
    %233 = vmatpush2.xpose.msra.mxu0 0.0
    %234 = vmatprep.mubr.f32.mxu0 0.0
    %235 = vmatmul.mubr.f32.gmra.mxu0 %v166
    %v236 = vpop.f32.mrf.mxu0
    %v237 = vadd.f32 %v62, %v236
    %v238 = vpop.f32.mrf.mxu0
    %239 = vdwg.mxu0
    %240 = vrot.lane.b32.xlu0 %v150, 96
    %v241 = vpop.permute.xlu0 %240
    %v243 = vsel %vm164, %v159, 0
    %v245 = vsel %vm164, %v241, 0
    %247 = vmatprep.subr.mxu0 0.0
    %248 = vmatpush1.xpose.msra.mxu0 0.0
    %249 = vmatprep.subr.mxu0 0.0
    %250 = vmatpush1.xpose.msra.mxu0 0.0
    %251 = vmatprep.subr.mxu0 0.0
    %252 = vmatpush1.xpose.msra.mxu0 0.0
    %253 = vmatprep.subr.mxu0 0.0
    %254 = vmatpush1.xpose.msra.mxu0 0.0
    %255 = vmatprep.subr.mxu0 0.0
    %256 = vmatpush1.xpose.msra.mxu0 0.0
    %257 = vmatprep.subr.mxu0 0.0
    %258 = vmatpush1.xpose.msra.mxu0 0.0
    %259 = vmatprep.subr.mxu0 0.0
    %260 = vmatpush1.xpose.msra.mxu0 0.0
    %261 = vmatprep.subr.mxu0 0.0
    %262 = vmatpush1.xpose.msra.mxu0 0.0
    %263 = vmatprep.subr.mxu0 0.0
    %264 = vmatpush1.xpose.msra.mxu0 0.0
    %265 = vmatprep.subr.mxu0 0.0
    %266 = vmatpush1.xpose.msra.mxu0 0.0
    %267 = vmatprep.subr.mxu0 0.0
    %268 = vmatpush1.xpose.msra.mxu0 0.0
    %269 = vmatprep.subr.mxu0 0.0
    %270 = vmatpush1.xpose.msra.mxu0 0.0
    %271 = vmatprep.subr.mxu0 0.0
    %272 = vmatpush1.xpose.msra.mxu0 0.0
    %273 = vmatprep.subr.mxu0 0.0
    %274 = vmatpush1.xpose.msra.mxu0 0.0
    %275 = vmatprep.subr.mxu0 0.0
    %276 = vmatpush1.xpose.msra.mxu0 0.0
    %277 = vmatprep.subr.mxu0 0.0
    %278 = vmatpush1.xpose.msra.mxu0 %v245
    %279 = vmatprep.subr.mxu0 0.0
    %280 = vmatpush2.xpose.msra.mxu0 0.0
    %281 = vmatprep.subr.mxu0 0.0
    %282 = vmatpush2.xpose.msra.mxu0 0.0
    %283 = vmatprep.subr.mxu0 0.0
    %284 = vmatpush2.xpose.msra.mxu0 0.0
    %285 = vmatprep.subr.mxu0 0.0
    %286 = vmatpush2.xpose.msra.mxu0 0.0
    %287 = vmatprep.subr.mxu0 0.0
    %288 = vmatpush2.xpose.msra.mxu0 0.0
    %289 = vmatprep.subr.mxu0 0.0
    %290 = vmatpush2.xpose.msra.mxu0 0.0
    %291 = vmatprep.subr.mxu0 0.0
    %292 = vmatpush2.xpose.msra.mxu0 0.0
    %293 = vmatprep.subr.mxu0 0.0
    %294 = vmatpush2.xpose.msra.mxu0 0.0
    %295 = vmatprep.subr.mxu0 0.0
    %296 = vmatpush2.xpose.msra.mxu0 0.0
    %297 = vmatprep.subr.mxu0 0.0
    %298 = vmatpush2.xpose.msra.mxu0 0.0
    %299 = vmatprep.subr.mxu0 0.0
    %300 = vmatpush2.xpose.msra.mxu0 0.0
    %301 = vmatprep.subr.mxu0 0.0
    %302 = vmatpush2.xpose.msra.mxu0 0.0
    %303 = vmatprep.subr.mxu0 0.0
    %304 = vmatpush2.xpose.msra.mxu0 0.0
    %305 = vmatprep.subr.mxu0 0.0
    %306 = vmatpush2.xpose.msra.mxu0 0.0
    %307 = vmatprep.subr.mxu0 0.0
    %308 = vmatpush2.xpose.msra.mxu0 0.0
    %309 = vmatprep.subr.mxu0 0.0
    %310 = vmatpush2.xpose.msra.mxu0 0.0
    %311 = vmatprep.mubr.f32.mxu0 0.0
    %312 = vmatmul.mubr.f32.gmra.mxu0 %v243
    %v313 = vpop.f32.mrf.mxu0
    %v314 = vadd.f32 %v62, %v313
    %v315 = vpop.f32.mrf.mxu0
    %316 = vdwg.mxu0
    %317 = vrot.lane.b32.xlu0 %v153, 96
    %v318 = vpop.permute.xlu0 %317
    %v320 = vsel %vm164, %v160, 0
    %v322 = vsel %vm164, %v318, 0
    %324 = vmatprep.subr.mxu0 0.0
    %325 = vmatpush1.xpose.msra.mxu0 0.0
    %326 = vmatprep.subr.mxu0 0.0
    %327 = vmatpush1.xpose.msra.mxu0 0.0
    %328 = vmatprep.subr.mxu0 0.0
    %329 = vmatpush1.xpose.msra.mxu0 0.0
    %330 = vmatprep.subr.mxu0 0.0
    %331 = vmatpush1.xpose.msra.mxu0 0.0
    %332 = vmatprep.subr.mxu0 0.0
    %333 = vmatpush1.xpose.msra.mxu0 0.0
    %334 = vmatprep.subr.mxu0 0.0
    %335 = vmatpush1.xpose.msra.mxu0 0.0
    %336 = vmatprep.subr.mxu0 0.0
    %337 = vmatpush1.xpose.msra.mxu0 0.0
    %338 = vmatprep.subr.mxu0 0.0
    %339 = vmatpush1.xpose.msra.mxu0 0.0
    %340 = vmatprep.subr.mxu0 0.0
    %341 = vmatpush1.xpose.msra.mxu0 0.0
    %342 = vmatprep.subr.mxu0 0.0
    %343 = vmatpush1.xpose.msra.mxu0 0.0
    %344 = vmatprep.subr.mxu0 0.0
    %345 = vmatpush1.xpose.msra.mxu0 0.0
    %346 = vmatprep.subr.mxu0 0.0
    %347 = vmatpush1.xpose.msra.mxu0 0.0
    %348 = vmatprep.subr.mxu0 0.0
    %349 = vmatpush1.xpose.msra.mxu0 0.0
    %350 = vmatprep.subr.mxu0 0.0
    %351 = vmatpush1.xpose.msra.mxu0 0.0
    %352 = vmatprep.subr.mxu0 0.0
    %353 = vmatpush1.xpose.msra.mxu0 0.0
    %354 = vmatprep.subr.mxu0 0.0
    %355 = vmatpush1.xpose.msra.mxu0 %v322
    %356 = vmatprep.subr.mxu0 0.0
    %357 = vmatpush2.xpose.msra.mxu0 0.0
    %358 = vmatprep.subr.mxu0 0.0
    %359 = vmatpush2.xpose.msra.mxu0 0.0
    %360 = vmatprep.subr.mxu0 0.0
    %361 = vmatpush2.xpose.msra.mxu0 0.0
    %362 = vmatprep.subr.mxu0 0.0
    %363 = vmatpush2.xpose.msra.mxu0 0.0
    %364 = vmatprep.subr.mxu0 0.0
    %365 = vmatpush2.xpose.msra.mxu0 0.0
    %366 = vmatprep.subr.mxu0 0.0
    %367 = vmatpush2.xpose.msra.mxu0 0.0
    %368 = vmatprep.subr.mxu0 0.0
    %369 = vmatpush2.xpose.msra.mxu0 0.0
    %370 = vmatprep.subr.mxu0 0.0
    %371 = vmatpush2.xpose.msra.mxu0 0.0
    %372 = vmatprep.subr.mxu0 0.0
    %373 = vmatpush2.xpose.msra.mxu0 0.0
    %374 = vmatprep.subr.mxu0 0.0
    %375 = vmatpush2.xpose.msra.mxu0 0.0
    %376 = vmatprep.subr.mxu0 0.0
    %377 = vmatpush2.xpose.msra.mxu0 0.0
    %378 = vmatprep.subr.mxu0 0.0
    %379 = vmatpush2.xpose.msra.mxu0 0.0
    %380 = vmatprep.subr.mxu0 0.0
    %381 = vmatpush2.xpose.msra.mxu0 0.0
    %382 = vmatprep.subr.mxu0 0.0
    %383 = vmatpush2.xpose.msra.mxu0 0.0
    %384 = vmatprep.subr.mxu0 0.0
    %385 = vmatpush2.xpose.msra.mxu0 0.0
    %386 = vmatprep.subr.mxu0 0.0
    %387 = vmatpush2.xpose.msra.mxu0 0.0
    %388 = vmatprep.mubr.f32.mxu0 0.0
    %389 = vmatmul.mubr.f32.gmra.mxu0 %v320
    %v390 = vpop.f32.mrf.mxu0
    %v391 = vadd.f32 %v62, %v390
    %v392 = vpop.f32.mrf.mxu0
    %393 = vdwg.mxu0
    %394 = vrot.lane.b32.xlu0 %v156, 96
    %v395 = vpop.permute.xlu0 %394
    %v397 = vsel %vm164, %v161, 0
    %v399 = vsel %vm164, %v395, 0
    %401 = vmatprep.subr.mxu0 0.0
    %402 = vmatpush1.xpose.msra.mxu0 0.0
    %403 = vmatprep.subr.mxu0 0.0
    %404 = vmatpush1.xpose.msra.mxu0 0.0
    %405 = vmatprep.subr.mxu0 0.0
    %406 = vmatpush1.xpose.msra.mxu0 0.0
    %407 = vmatprep.subr.mxu0 0.0
    %408 = vmatpush1.xpose.msra.mxu0 0.0
    %409 = vmatprep.subr.mxu0 0.0
    %410 = vmatpush1.xpose.msra.mxu0 0.0
    %411 = vmatprep.subr.mxu0 0.0
    %412 = vmatpush1.xpose.msra.mxu0 0.0
    %413 = vmatprep.subr.mxu0 0.0
    %414 = vmatpush1.xpose.msra.mxu0 0.0
    %415 = vmatprep.subr.mxu0 0.0
    %416 = vmatpush1.xpose.msra.mxu0 0.0
    %417 = vmatprep.subr.mxu0 0.0
    %418 = vmatpush1.xpose.msra.mxu0 0.0
    %419 = vmatprep.subr.mxu0 0.0
    %420 = vmatpush1.xpose.msra.mxu0 0.0
    %421 = vmatprep.subr.mxu0 0.0
    %422 = vmatpush1.xpose.msra.mxu0 0.0
    %423 = vmatprep.subr.mxu0 0.0
    %424 = vmatpush1.xpose.msra.mxu0 0.0
    %425 = vmatprep.subr.mxu0 0.0
    %426 = vmatpush1.xpose.msra.mxu0 0.0
    %427 = vmatprep.subr.mxu0 0.0
    %428 = vmatpush1.xpose.msra.mxu0 0.0
    %429 = vmatprep.subr.mxu0 0.0
    %430 = vmatpush1.xpose.msra.mxu0 0.0
    %431 = vmatprep.subr.mxu0 0.0
    %432 = vmatpush1.xpose.msra.mxu0 %v399
    %433 = vmatprep.subr.mxu0 0.0
    %434 = vmatpush2.xpose.msra.mxu0 0.0
    %435 = vmatprep.subr.mxu0 0.0
    %436 = vmatpush2.xpose.msra.mxu0 0.0
    %437 = vmatprep.subr.mxu0 0.0
    %438 = vmatpush2.xpose.msra.mxu0 0.0
    %439 = vmatprep.subr.mxu0 0.0
    %440 = vmatpush2.xpose.msra.mxu0 0.0
    %441 = vmatprep.subr.mxu0 0.0
    %442 = vmatpush2.xpose.msra.mxu0 0.0
    %443 = vmatprep.subr.mxu0 0.0
    %444 = vmatpush2.xpose.msra.mxu0 0.0
    %445 = vmatprep.subr.mxu0 0.0
    %446 = vmatpush2.xpose.msra.mxu0 0.0
    %447 = vmatprep.subr.mxu0 0.0
    %448 = vmatpush2.xpose.msra.mxu0 0.0
    %449 = vmatprep.subr.mxu0 0.0
    %450 = vmatpush2.xpose.msra.mxu0 0.0
    %451 = vmatprep.subr.mxu0 0.0
    %452 = vmatpush2.xpose.msra.mxu0 0.0
    %453 = vmatprep.subr.mxu0 0.0
    %454 = vmatpush2.xpose.msra.mxu0 0.0
    %455 = vmatprep.subr.mxu0 0.0
    %456 = vmatpush2.xpose.msra.mxu0 0.0
    %457 = vmatprep.subr.mxu0 0.0
    %458 = vmatpush2.xpose.msra.mxu0 0.0
    %459 = vmatprep.subr.mxu0 0.0
    %460 = vmatpush2.xpose.msra.mxu0 0.0
    %461 = vmatprep.subr.mxu0 0.0
    %462 = vmatpush2.xpose.msra.mxu0 0.0
    %463 = vmatprep.subr.mxu0 0.0
    %464 = vmatpush2.xpose.msra.mxu0 0.0
    %465 = vmatprep.mubr.f32.mxu0 0.0
    %466 = vmatmul.mubr.f32.gmra.mxu0 %v397
    %v467 = vpop.f32.mrf.mxu0
    %v468 = vadd.f32 %v62, %v467
    %v469 = vpop.f32.mrf.mxu0
    %470 = vdwg.mxu0
    %v471 = vsel %vm164, %v237, -inf
    %472 = vmax.xlane.f32.xlu0 %v471
    %v473 = vpop.xlane.xlu0 %472
    %v474 = vsel %vm164, %v314, -inf
    %475 = vmax.xlane.f32.xlu0 %v474
    %v476 = vpop.xlane.xlu0 %475
    %v477 = vsel %vm164, %v391, -inf
    %478 = vmax.xlane.f32.xlu0 %v477
    %v479 = vpop.xlane.xlu0 %478
    %v480 = vsel %vm164, %v468, -inf
    %481 = vmax.xlane.f32.xlu0 %v480
    %v482 = vpop.xlane.xlu0 %481
    %v483 = vsub.f32 %v237, %v473
    %v484 = vsub.f32 %v314, %v476
    %v485 = vsub.f32 %v391, %v479
    %v486 = vsub.f32 %v468, %v482
    %v487 = vmul.f32 %v483, 1.442695
    %v488 = vpow.pop %v487
    %v489 = vmul.f32 %v484, 1.442695
    %v490 = vpow.pop %v489
    %v491 = vmul.f32 %v485, 1.442695
    %v492 = vpow.pop %v491
    %v493 = vmul.f32 %v486, 1.442695
    %v494 = vpow.pop %v493
    %v495 = vsel %vm164, %v488, 0.0
    %496 = vadd.xlane.f32.xlu0 %v495
    %v497 = vpop.xlane.xlu0 %496
    %v498 = vsel %vm164, %v490, 0.0
    %499 = vadd.xlane.f32.xlu0 %v498
    %v500 = vpop.xlane.xlu0 %499
    %v501 = vsel %vm164, %v492, 0.0
    %502 = vadd.xlane.f32.xlu0 %v501
    %v503 = vpop.xlane.xlu0 %502
    %v504 = vsel %vm164, %v494, 0.0
    %505 = vadd.xlane.f32.xlu0 %v504
    %v506 = vpop.xlane.xlu0 %505
    %v507 = vrcp.pop %v497
    %v508 = vrcp.pop %v500
    %v509 = vrcp.pop %v503
    %v510 = vrcp.pop %v506
    %v511 = vmul.f32 %v488, %v507
    %v512 = vmul.f32 %v490, %v508
    %v513 = vmul.f32 %v492, %v509
    %v514 = vmul.f32 %v494, %v510
    %515 = vrot.lane.b32.xlu0 %v145, 64
    %v516 = vpop.permute.xlu0 %515
    %v519 = vsel %vm164, %v511, 0
    %521 = vmatprep.subr.mxu0 0.0
    %522 = vmatpush1.msra.mxu0 0.0
    %523 = vmatprep.subr.mxu0 0.0
    %524 = vmatpush1.msra.mxu0 0.0
    %525 = vmatprep.subr.mxu0 0.0
    %526 = vmatpush1.msra.mxu0 0.0
    %527 = vmatprep.subr.mxu0 0.0
    %528 = vmatpush1.msra.mxu0 0.0
    %529 = vmatprep.subr.mxu0 0.0
    %530 = vmatpush1.msra.mxu0 0.0
    %531 = vmatprep.subr.mxu0 0.0
    %532 = vmatpush1.msra.mxu0 0.0
    %533 = vmatprep.subr.mxu0 0.0
    %534 = vmatpush1.msra.mxu0 0.0
    %535 = vmatprep.subr.mxu0 0.0
    %536 = vmatpush1.msra.mxu0 0.0
    %537 = vmatprep.subr.mxu0 0.0
    %538 = vmatpush1.msra.mxu0 0.0
    %539 = vmatprep.subr.mxu0 0.0
    %540 = vmatpush1.msra.mxu0 0.0
    %541 = vmatprep.subr.mxu0 0.0
    %542 = vmatpush1.msra.mxu0 0.0
    %543 = vmatprep.subr.mxu0 0.0
    %544 = vmatpush1.msra.mxu0 0.0
    %545 = vmatprep.subr.mxu0 0.0
    %546 = vmatpush1.msra.mxu0 0.0
    %547 = vmatprep.subr.mxu0 0.0
    %548 = vmatpush1.msra.mxu0 0.0
    %549 = vmatprep.subr.mxu0 0.0
    %550 = vmatpush1.msra.mxu0 0.0
    %551 = vmatprep.subr.mxu0 0.0
    %552 = vmatpush1.msra.mxu0 %v516
    %553 = vmatprep.subr.mxu0 0.0
    %554 = vmatpush2.msra.mxu0 0.0
    %555 = vmatprep.subr.mxu0 0.0
    %556 = vmatpush2.msra.mxu0 0.0
    %557 = vmatprep.subr.mxu0 0.0
    %558 = vmatpush2.msra.mxu0 0.0
    %559 = vmatprep.subr.mxu0 0.0
    %560 = vmatpush2.msra.mxu0 0.0
    %561 = vmatprep.subr.mxu0 0.0
    %562 = vmatpush2.msra.mxu0 0.0
    %563 = vmatprep.subr.mxu0 0.0
    %564 = vmatpush2.msra.mxu0 0.0
    %565 = vmatprep.subr.mxu0 0.0
    %566 = vmatpush2.msra.mxu0 0.0
    %567 = vmatprep.subr.mxu0 0.0
    %568 = vmatpush2.msra.mxu0 0.0
    %569 = vmatprep.subr.mxu0 0.0
    %570 = vmatpush2.msra.mxu0 0.0
    %571 = vmatprep.subr.mxu0 0.0
    %572 = vmatpush2.msra.mxu0 0.0
    %573 = vmatprep.subr.mxu0 0.0
    %574 = vmatpush2.msra.mxu0 0.0
    %575 = vmatprep.subr.mxu0 0.0
    %576 = vmatpush2.msra.mxu0 0.0
    %577 = vmatprep.subr.mxu0 0.0
    %578 = vmatpush2.msra.mxu0 0.0
    %579 = vmatprep.subr.mxu0 0.0
    %580 = vmatpush2.msra.mxu0 0.0
    %581 = vmatprep.subr.mxu0 0.0
    %582 = vmatpush2.msra.mxu0 0.0
    %583 = vmatprep.subr.mxu0 0.0
    %584 = vmatpush2.msra.mxu0 0.0
    %585 = vmatprep.mubr.f32.mxu0 0.0
    %586 = vmatmul.mubr.f32.gmra.mxu0 %v519
    %v587 = vpop.f32.mrf.mxu0
    %v588 = vadd.f32 0.0, %v587
    %v589 = vpop.f32.mrf.mxu0
    %590 = vdwg.mxu0
    %591 = vrot.lane.b32.xlu0 %v150, 64
    %v592 = vpop.permute.xlu0 %591
    %v595 = vsel %vm164, %v512, 0
    %597 = vmatprep.subr.mxu0 0.0
    %598 = vmatpush1.msra.mxu0 0.0
    %599 = vmatprep.subr.mxu0 0.0
    %600 = vmatpush1.msra.mxu0 0.0
    %601 = vmatprep.subr.mxu0 0.0
    %602 = vmatpush1.msra.mxu0 0.0
    %603 = vmatprep.subr.mxu0 0.0
    %604 = vmatpush1.msra.mxu0 0.0
    %605 = vmatprep.subr.mxu0 0.0
    %606 = vmatpush1.msra.mxu0 0.0
    %607 = vmatprep.subr.mxu0 0.0
    %608 = vmatpush1.msra.mxu0 0.0
    %609 = vmatprep.subr.mxu0 0.0
    %610 = vmatpush1.msra.mxu0 0.0
    %611 = vmatprep.subr.mxu0 0.0
    %612 = vmatpush1.msra.mxu0 0.0
    %613 = vmatprep.subr.mxu0 0.0
    %614 = vmatpush1.msra.mxu0 0.0
    %615 = vmatprep.subr.mxu0 0.0
    %616 = vmatpush1.msra.mxu0 0.0
    %617 = vmatprep.subr.mxu0 0.0
    %618 = vmatpush1.msra.mxu0 0.0
    %619 = vmatprep.subr.mxu0 0.0
    %620 = vmatpush1.msra.mxu0 0.0
    %621 = vmatprep.subr.mxu0 0.0
    %622 = vmatpush1.msra.mxu0 0.0
    %623 = vmatprep.subr.mxu0 0.0
    %624 = vmatpush1.msra.mxu0 0.0
    %625 = vmatprep.subr.mxu0 0.0
    %626 = vmatpush1.msra.mxu0 0.0
    %627 = vmatprep.subr.mxu0 0.0
    %628 = vmatpush1.msra.mxu0 %v592
    %629 = vmatprep.subr.mxu0 0.0
    %630 = vmatpush2.msra.mxu0 0.0
    %631 = vmatprep.subr.mxu0 0.0
    %632 = vmatpush2.msra.mxu0 0.0
    %633 = vmatprep.subr.mxu0 0.0
    %634 = vmatpush2.msra.mxu0 0.0
    %635 = vmatprep.subr.mxu0 0.0
    %636 = vmatpush2.msra.mxu0 0.0
    %637 = vmatprep.subr.mxu0 0.0
    %638 = vmatpush2.msra.mxu0 0.0
    %639 = vmatprep.subr.mxu0 0.0
    %640 = vmatpush2.msra.mxu0 0.0
    %641 = vmatprep.subr.mxu0 0.0
    %642 = vmatpush2.msra.mxu0 0.0
    %643 = vmatprep.subr.mxu0 0.0
    %644 = vmatpush2.msra.mxu0 0.0
    %645 = vmatprep.subr.mxu0 0.0
    %646 = vmatpush2.msra.mxu0 0.0
    %647 = vmatprep.subr.mxu0 0.0
    %648 = vmatpush2.msra.mxu0 0.0
    %649 = vmatprep.subr.mxu0 0.0
    %650 = vmatpush2.msra.mxu0 0.0
    %651 = vmatprep.subr.mxu0 0.0
    %652 = vmatpush2.msra.mxu0 0.0
    %653 = vmatprep.subr.mxu0 0.0
    %654 = vmatpush2.msra.mxu0 0.0
    %655 = vmatprep.subr.mxu0 0.0
    %656 = vmatpush2.msra.mxu0 0.0
    %657 = vmatprep.subr.mxu0 0.0
    %658 = vmatpush2.msra.mxu0 0.0
    %659 = vmatprep.subr.mxu0 0.0
    %660 = vmatpush2.msra.mxu0 0.0
    %661 = vmatprep.mubr.f32.mxu0 0.0
    %662 = vmatmul.mubr.f32.gmra.mxu0 %v595
    %v663 = vpop.f32.mrf.mxu0
    %v664 = vadd.f32 0.0, %v663
    %v665 = vpop.f32.mrf.mxu0
    %666 = vdwg.mxu0
    %667 = vrot.lane.b32.xlu0 %v153, 64
    %v668 = vpop.permute.xlu0 %667
    %v671 = vsel %vm164, %v513, 0
    %673 = vmatprep.subr.mxu0 0.0
    %674 = vmatpush1.msra.mxu0 0.0
    %675 = vmatprep.subr.mxu0 0.0
    %676 = vmatpush1.msra.mxu0 0.0
    %677 = vmatprep.subr.mxu0 0.0
    %678 = vmatpush1.msra.mxu0 0.0
    %679 = vmatprep.subr.mxu0 0.0
    %680 = vmatpush1.msra.mxu0 0.0
    %681 = vmatprep.subr.mxu0 0.0
    %682 = vmatpush1.msra.mxu0 0.0
    %683 = vmatprep.subr.mxu0 0.0
    %684 = vmatpush1.msra.mxu0 0.0
    %685 = vmatprep.subr.mxu0 0.0
    %686 = vmatpush1.msra.mxu0 0.0
    %687 = vmatprep.subr.mxu0 0.0
    %688 = vmatpush1.msra.mxu0 0.0
    %689 = vmatprep.subr.mxu0 0.0
    %690 = vmatpush1.msra.mxu0 0.0
    %691 = vmatprep.subr.mxu0 0.0
    %692 = vmatpush1.msra.mxu0 0.0
    %693 = vmatprep.subr.mxu0 0.0
    %694 = vmatpush1.msra.mxu0 0.0
    %695 = vmatprep.subr.mxu0 0.0
    %696 = vmatpush1.msra.mxu0 0.0
    %697 = vmatprep.subr.mxu0 0.0
    %698 = vmatpush1.msra.mxu0 0.0
    %699 = vmatprep.subr.mxu0 0.0
    %700 = vmatpush1.msra.mxu0 0.0
    %701 = vmatprep.subr.mxu0 0.0
    %702 = vmatpush1.msra.mxu0 0.0
    %703 = vmatprep.subr.mxu0 0.0
    %704 = vmatpush1.msra.mxu0 %v668
    %705 = vmatprep.subr.mxu0 0.0
    %706 = vmatpush2.msra.mxu0 0.0
    %707 = vmatprep.subr.mxu0 0.0
    %708 = vmatpush2.msra.mxu0 0.0
    %709 = vmatprep.subr.mxu0 0.0
    %710 = vmatpush2.msra.mxu0 0.0
    %711 = vmatprep.subr.mxu0 0.0
    %712 = vmatpush2.msra.mxu0 0.0
    %713 = vmatprep.subr.mxu0 0.0
    %714 = vmatpush2.msra.mxu0 0.0
    %715 = vmatprep.subr.mxu0 0.0
    %716 = vmatpush2.msra.mxu0 0.0
    %717 = vmatprep.subr.mxu0 0.0
    %718 = vmatpush2.msra.mxu0 0.0
    %719 = vmatprep.subr.mxu0 0.0
    %720 = vmatpush2.msra.mxu0 0.0
    %721 = vmatprep.subr.mxu0 0.0
    %722 = vmatpush2.msra.mxu0 0.0
    %723 = vmatprep.subr.mxu0 0.0
    %724 = vmatpush2.msra.mxu0 0.0
    %725 = vmatprep.subr.mxu0 0.0
    %726 = vmatpush2.msra.mxu0 0.0
    %727 = vmatprep.subr.mxu0 0.0
    %728 = vmatpush2.msra.mxu0 0.0
    %729 = vmatprep.subr.mxu0 0.0
    %730 = vmatpush2.msra.mxu0 0.0
    %731 = vmatprep.subr.mxu0 0.0
    %732 = vmatpush2.msra.mxu0 0.0
    %733 = vmatprep.subr.mxu0 0.0
    %734 = vmatpush2.msra.mxu0 0.0
    %735 = vmatprep.subr.mxu0 0.0
    %736 = vmatpush2.msra.mxu0 0.0
    %737 = vmatprep.mubr.f32.mxu0 0.0
    %738 = vmatmul.mubr.f32.gmra.mxu0 %v671
    %v739 = vpop.f32.mrf.mxu0
    %v740 = vadd.f32 0.0, %v739
    %v741 = vpop.f32.mrf.mxu0
    %742 = vdwg.mxu0
    %743 = vrot.lane.b32.xlu0 %v156, 64
    %v744 = vpop.permute.xlu0 %743
    %v747 = vsel %vm164, %v514, 0
    %749 = vmatprep.subr.mxu0 0.0
    %750 = vmatpush1.msra.mxu0 0.0
    %751 = vmatprep.subr.mxu0 0.0
    %752 = vmatpush1.msra.mxu0 0.0
    %753 = vmatprep.subr.mxu0 0.0
    %754 = vmatpush1.msra.mxu0 0.0
    %755 = vmatprep.subr.mxu0 0.0
    %756 = vmatpush1.msra.mxu0 0.0
    %757 = vmatprep.subr.mxu0 0.0
    %758 = vmatpush1.msra.mxu0 0.0
    %759 = vmatprep.subr.mxu0 0.0
    %760 = vmatpush1.msra.mxu0 0.0
    %761 = vmatprep.subr.mxu0 0.0
    %762 = vmatpush1.msra.mxu0 0.0
    %763 = vmatprep.subr.mxu0 0.0
    %764 = vmatpush1.msra.mxu0 0.0
    %765 = vmatprep.subr.mxu0 0.0
    %766 = vmatpush1.msra.mxu0 0.0
    %767 = vmatprep.subr.mxu0 0.0
    %768 = vmatpush1.msra.mxu0 0.0
    %769 = vmatprep.subr.mxu0 0.0
    %770 = vmatpush1.msra.mxu0 0.0
    %771 = vmatprep.subr.mxu0 0.0
    %772 = vmatpush1.msra.mxu0 0.0
    %773 = vmatprep.subr.mxu0 0.0
    %774 = vmatpush1.msra.mxu0 0.0
    %775 = vmatprep.subr.mxu0 0.0
    %776 = vmatpush1.msra.mxu0 0.0
    %777 = vmatprep.subr.mxu0 0.0
    %778 = vmatpush1.msra.mxu0 0.0
    %779 = vmatprep.subr.mxu0 0.0
    %780 = vmatpush1.msra.mxu0 %v744
    %781 = vmatprep.subr.mxu0 0.0
    %782 = vmatpush2.msra.mxu0 0.0
    %783 = vmatprep.subr.mxu0 0.0
    %784 = vmatpush2.msra.mxu0 0.0
    %785 = vmatprep.subr.mxu0 0.0
    %786 = vmatpush2.msra.mxu0 0.0
    %787 = vmatprep.subr.mxu0 0.0
    %788 = vmatpush2.msra.mxu0 0.0
    %789 = vmatprep.subr.mxu0 0.0
    %790 = vmatpush2.msra.mxu0 0.0
    %791 = vmatprep.subr.mxu0 0.0
    %792 = vmatpush2.msra.mxu0 0.0
    %793 = vmatprep.subr.mxu0 0.0
    %794 = vmatpush2.msra.mxu0 0.0
    %795 = vmatprep.subr.mxu0 0.0
    %796 = vmatpush2.msra.mxu0 0.0
    %797 = vmatprep.subr.mxu0 0.0
    %798 = vmatpush2.msra.mxu0 0.0
    %799 = vmatprep.subr.mxu0 0.0
    %800 = vmatpush2.msra.mxu0 0.0
    %801 = vmatprep.subr.mxu0 0.0
    %802 = vmatpush2.msra.mxu0 0.0
    %803 = vmatprep.subr.mxu0 0.0
    %804 = vmatpush2.msra.mxu0 0.0
    %805 = vmatprep.subr.mxu0 0.0
    %806 = vmatpush2.msra.mxu0 0.0
    %807 = vmatprep.subr.mxu0 0.0
    %808 = vmatpush2.msra.mxu0 0.0
    %809 = vmatprep.subr.mxu0 0.0
    %810 = vmatpush2.msra.mxu0 0.0
    %811 = vmatprep.subr.mxu0 0.0
    %812 = vmatpush2.msra.mxu0 0.0
    %813 = vmatprep.mubr.f32.mxu0 0.0
    %814 = vmatmul.mubr.f32.gmra.mxu0 %v747
    %v815 = vpop.f32.mrf.mxu0
    %v816 = vadd.f32 0.0, %v815
    %v817 = vpop.f32.mrf.mxu0
    %818 = vdwg.mxu0
    %820 = vrot.lane.b32.xlu0 %v664, 8
    %v821 = vpop.permute.xlu0 %820
    %824 = vrot.lane.b32.xlu0 %v740, 16
    %v825 = vpop.permute.xlu0 %824
    %828 = vrot.lane.b32.xlu0 %v816, 24
    %v829 = vpop.permute.xlu0 %828
    %v831 = vsel %vm164, %v588, %v821
    %vm832 = vcmask 130048
    %v833 = vsel %vm832, %v831, %v825
    %vm834 = vcmask 195584
    %v835 = vsel %vm834, %v833, %v829
    %v836 = vld [vmem:[%s4] sm:$0xff]
    %v837 = vld [vmem:[%s4 + $0x8] sm:$0xff]
    %v838 = vld [vmem:[%s4 + $0x10] sm:$0xff]
    %v839 = vld [vmem:[%s4 + $0x18] sm:$0xff]
    %v840 = vld [vmem:[%s5] sm:$0x1]
    %v842 = vlaneseq
    %v843 = vshrl.u32 %v842, 7
    %v844 = vsub.s32 0, %v843
    %v845 = vrot.slane %v840, %v844
    %v848 = vsel %vm74, %v835, 0
    %850 = vmatprep.subr.mxu0 0.0
    %851 = vmatpush1.msra.mxu0 0.0
    %852 = vmatprep.subr.mxu0 0.0
    %853 = vmatpush1.msra.mxu0 0.0
    %854 = vmatprep.subr.mxu0 0.0
    %855 = vmatpush1.msra.mxu0 0.0
    %856 = vmatprep.subr.mxu0 0.0
    %857 = vmatpush1.msra.mxu0 0.0
    %858 = vmatprep.subr.mxu0 0.0
    %859 = vmatpush1.msra.mxu0 0.0
    %860 = vmatprep.subr.mxu0 0.0
    %861 = vmatpush1.msra.mxu0 0.0
    %862 = vmatprep.subr.mxu0 0.0
    %863 = vmatpush1.msra.mxu0 0.0
    %864 = vmatprep.subr.mxu0 0.0
    %865 = vmatpush1.msra.mxu0 0.0
    %866 = vmatprep.subr.mxu0 0.0
    %867 = vmatpush1.msra.mxu0 0.0
    %868 = vmatprep.subr.mxu0 0.0
    %869 = vmatpush1.msra.mxu0 0.0
    %870 = vmatprep.subr.mxu0 0.0
    %871 = vmatpush1.msra.mxu0 0.0
    %872 = vmatprep.subr.mxu0 0.0
    %873 = vmatpush1.msra.mxu0 0.0
    %874 = vmatprep.subr.mxu0 0.0
    %875 = vmatpush1.msra.mxu0 %v839
    %876 = vmatprep.subr.mxu0 0.0
    %877 = vmatpush1.msra.mxu0 %v838
    %878 = vmatprep.subr.mxu0 0.0
    %879 = vmatpush1.msra.mxu0 %v837
    %880 = vmatprep.subr.mxu0 0.0
    %881 = vmatpush1.msra.mxu0 %v836
    %882 = vmatprep.subr.mxu0 0.0
    %883 = vmatpush2.msra.mxu0 0.0
    %884 = vmatprep.subr.mxu0 0.0
    %885 = vmatpush2.msra.mxu0 0.0
    %886 = vmatprep.subr.mxu0 0.0
    %887 = vmatpush2.msra.mxu0 0.0
    %888 = vmatprep.subr.mxu0 0.0
    %889 = vmatpush2.msra.mxu0 0.0
    %890 = vmatprep.subr.mxu0 0.0
    %891 = vmatpush2.msra.mxu0 0.0
    %892 = vmatprep.subr.mxu0 0.0
    %893 = vmatpush2.msra.mxu0 0.0
    %894 = vmatprep.subr.mxu0 0.0
    %895 = vmatpush2.msra.mxu0 0.0
    %896 = vmatprep.subr.mxu0 0.0
    %897 = vmatpush2.msra.mxu0 0.0
    %898 = vmatprep.subr.mxu0 0.0
    %899 = vmatpush2.msra.mxu0 0.0
    %900 = vmatprep.subr.mxu0 0.0
    %901 = vmatpush2.msra.mxu0 0.0
    %902 = vmatprep.subr.mxu0 0.0
    %903 = vmatpush2.msra.mxu0 0.0
    %904 = vmatprep.subr.mxu0 0.0
    %905 = vmatpush2.msra.mxu0 0.0
    %906 = vmatprep.subr.mxu0 0.0
    %907 = vmatpush2.msra.mxu0 0.0
    %908 = vmatprep.subr.mxu0 0.0
    %909 = vmatpush2.msra.mxu0 0.0
    %910 = vmatprep.subr.mxu0 0.0
    %911 = vmatpush2.msra.mxu0 0.0
    %912 = vmatprep.subr.mxu0 0.0
    %913 = vmatpush2.msra.mxu0 0.0
    %914 = vmatprep.mubr.f32.mxu0 0.0
    %915 = vmatmul.mubr.f32.gmra.mxu0 %v848
    %v916 = vpop.f32.mrf.mxu0
    %v917 = vadd.f32 %v845, %v916
    %v918 = vpop.f32.mrf.mxu0
    %919 = vdwg.mxu0
    %v920 = vadd.f32 %v56, %v917
    %v921 = vld [vmem:[%s10] sm:$0x1]
    %v922 = vld [vmem:[%s11] sm:$0x1]
    %v923 = vsel %vm74, %v920, 0.0
    %924 = vadd.xlane.f32.xlu0 %v923
    %v925 = vpop.xlane.xlu0 %924
    %v926 = vrcp.pop 32.0
    %v927 = vmul.f32 %v925, %v926
    %v928 = vsub.f32 %v920, %v927
    %v929 = vmul.f32 %v928, %v928
    %v930 = vsel %vm74, %v929, 0.0
    %931 = vadd.xlane.f32.xlu0 %v930
    %v932 = vpop.xlane.xlu0 %931
    %v933 = vmul.f32 %v932, %v926
    %v934 = vadd.f32 %v933, 1e-05
    %v935 = vrsqrt.pop %v934
    %v936 = vmul.f32 %v928, %v935
    %v938 = vlaneseq
    %v939 = vshrl.u32 %v938, 7
    %v940 = vsub.s32 0, %v939
    %v941 = vrot.slane %v921, %v940
    %v943 = vmul.f32 %v936, %v941
    %v945 = vlaneseq
    %v946 = vshrl.u32 %v945, 7
    %v947 = vsub.s32 0, %v946
    %v948 = vrot.slane %v922, %v947
    %v950 = vadd.f32 %v943, %v948
    %v951 = vld [vmem:[%s6] sm:$0xff]
    %v952 = vld [vmem:[%s6 + $0x8] sm:$0xff]
    %v953 = vld [vmem:[%s6 + $0x10] sm:$0xff]
    %v954 = vld [vmem:[%s6 + $0x18] sm:$0xff]
    %v955 = vld [vmem:[%s7] sm:$0x1]
    %v957 = vlaneseq
    %v958 = vshrl.u32 %v957, 7
    %v959 = vsub.s32 0, %v958
    %v960 = vrot.slane %v955, %v959
    %v963 = vsel %vm74, %v950, 0
    %965 = vmatprep.subr.mxu0 0.0
    %966 = vmatpush1.msra.mxu0 0.0
    %967 = vmatprep.subr.mxu0 0.0
    %968 = vmatpush1.msra.mxu0 0.0
    %969 = vmatprep.subr.mxu0 0.0
    %970 = vmatpush1.msra.mxu0 0.0
    %971 = vmatprep.subr.mxu0 0.0
    %972 = vmatpush1.msra.mxu0 0.0
    %973 = vmatprep.subr.mxu0 0.0
    %974 = vmatpush1.msra.mxu0 0.0
    %975 = vmatprep.subr.mxu0 0.0
    %976 = vmatpush1.msra.mxu0 0.0
    %977 = vmatprep.subr.mxu0 0.0
    %978 = vmatpush1.msra.mxu0 0.0
    %979 = vmatprep.subr.mxu0 0.0
    %980 = vmatpush1.msra.mxu0 0.0
    %981 = vmatprep.subr.mxu0 0.0
    %982 = vmatpush1.msra.mxu0 0.0
    %983 = vmatprep.subr.mxu0 0.0
    %984 = vmatpush1.msra.mxu0 0.0
    %985 = vmatprep.subr.mxu0 0.0
    %986 = vmatpush1.msra.mxu0 0.0
    %987 = vmatprep.subr.mxu0 0.0
    %988 = vmatpush1.msra.mxu0 0.0
    %989 = vmatprep.subr.mxu0 0.0
    %990 = vmatpush1.msra.mxu0 %v954
    %991 = vmatprep.subr.mxu0 0.0
    %992 = vmatpush1.msra.mxu0 %v953
    %993 = vmatprep.subr.mxu0 0.0
    %994 = vmatpush1.msra.mxu0 %v952
    %995 = vmatprep.subr.mxu0 0.0
    %996 = vmatpush1.msra.mxu0 %v951
    %997 = vmatprep.subr.mxu0 0.0
    %998 = vmatpush2.msra.mxu0 0.0
    %999 = vmatprep.subr.mxu0 0.0
    %1000 = vmatpush2.msra.mxu0 0.0
    %1001 = vmatprep.subr.mxu0 0.0
    %1002 = vmatpush2.msra.mxu0 0.0
    %1003 = vmatprep.subr.mxu0 0.0
    %1004 = vmatpush2.msra.mxu0 0.0
    %1005 = vmatprep.subr.mxu0 0.0
    %1006 = vmatpush2.msra.mxu0 0.0
    %1007 = vmatprep.subr.mxu0 0.0
    %1008 = vmatpush2.msra.mxu0 0.0
    %1009 = vmatprep.subr.mxu0 0.0
    %1010 = vmatpush2.msra.mxu0 0.0
    %1011 = vmatprep.subr.mxu0 0.0
    %1012 = vmatpush2.msra.mxu0 0.0
    %1013 = vmatprep.subr.mxu0 0.0
    %1014 = vmatpush2.msra.mxu0 0.0
    %1015 = vmatprep.subr.mxu0 0.0
    %1016 = vmatpush2.msra.mxu0 0.0
    %1017 = vmatprep.subr.mxu0 0.0
    %1018 = vmatpush2.msra.mxu0 0.0
    %1019 = vmatprep.subr.mxu0 0.0
    %1020 = vmatpush2.msra.mxu0 0.0
    %1021 = vmatprep.subr.mxu0 0.0
    %1022 = vmatpush2.msra.mxu0 0.0
    %1023 = vmatprep.subr.mxu0 0.0
    %1024 = vmatpush2.msra.mxu0 0.0
    %1025 = vmatprep.subr.mxu0 0.0
    %1026 = vmatpush2.msra.mxu0 0.0
    %1027 = vmatprep.subr.mxu0 0.0
    %1028 = vmatpush2.msra.mxu0 0.0
    %1029 = vmatprep.mubr.f32.mxu0 0.0
    %1030 = vmatmul.mubr.f32.gmra.mxu0 %v963
    %v1031 = vpop.f32.mrf.mxu0
    %v1032 = vadd.f32 %v960, %v1031
    %v1033 = vpop.f32.mrf.mxu0
    %1034 = vdwg.mxu0
    %v1035 = vmax.f32 %v1032, 0.0
    %v1036 = vld [vmem:[%s8] sm:$0xff]
    %v1037 = vld [vmem:[%s8 + $0x8] sm:$0xff]
    %v1038 = vld [vmem:[%s8 + $0x10] sm:$0xff]
    %v1039 = vld [vmem:[%s8 + $0x18] sm:$0xff]
    %v1040 = vld [vmem:[%s8 + $0x20] sm:$0xff]
    %v1041 = vld [vmem:[%s8 + $0x28] sm:$0xff]
    %v1042 = vld [vmem:[%s8 + $0x30] sm:$0xff]
    %v1043 = vld [vmem:[%s8 + $0x38] sm:$0xff]
    %v1044 = vld [vmem:[%s9] sm:$0x1]
    %v1046 = vlaneseq
    %v1047 = vshrl.u32 %v1046, 7
    %v1048 = vsub.s32 0, %v1047
    %v1049 = vrot.slane %v1044, %v1048
    %vm1051 = vcmask 523264
    %v1053 = vsel %vm1051, %v1035, 0
    %1055 = vmatprep.subr.mxu0 0.0
    %1056 = vmatpush1.msra.mxu0 0.0
    %1057 = vmatprep.subr.mxu0 0.0
    %1058 = vmatpush1.msra.mxu0 0.0
    %1059 = vmatprep.subr.mxu0 0.0
    %1060 = vmatpush1.msra.mxu0 0.0
    %1061 = vmatprep.subr.mxu0 0.0
    %1062 = vmatpush1.msra.mxu0 0.0
    %1063 = vmatprep.subr.mxu0 0.0
    %1064 = vmatpush1.msra.mxu0 0.0
    %1065 = vmatprep.subr.mxu0 0.0
    %1066 = vmatpush1.msra.mxu0 0.0
    %1067 = vmatprep.subr.mxu0 0.0
    %1068 = vmatpush1.msra.mxu0 0.0
    %1069 = vmatprep.subr.mxu0 0.0
    %1070 = vmatpush1.msra.mxu0 0.0
    %1071 = vmatprep.subr.mxu0 0.0
    %1072 = vmatpush1.msra.mxu0 %v1043
    %1073 = vmatprep.subr.mxu0 0.0
    %1074 = vmatpush1.msra.mxu0 %v1042
    %1075 = vmatprep.subr.mxu0 0.0
    %1076 = vmatpush1.msra.mxu0 %v1041
    %1077 = vmatprep.subr.mxu0 0.0
    %1078 = vmatpush1.msra.mxu0 %v1040
    %1079 = vmatprep.subr.mxu0 0.0
    %1080 = vmatpush1.msra.mxu0 %v1039
    %1081 = vmatprep.subr.mxu0 0.0
    %1082 = vmatpush1.msra.mxu0 %v1038
    %1083 = vmatprep.subr.mxu0 0.0
    %1084 = vmatpush1.msra.mxu0 %v1037
    %1085 = vmatprep.subr.mxu0 0.0
    %1086 = vmatpush1.msra.mxu0 %v1036
    %1087 = vmatprep.subr.mxu0 0.0
    %1088 = vmatpush2.msra.mxu0 0.0
    %1089 = vmatprep.subr.mxu0 0.0
    %1090 = vmatpush2.msra.mxu0 0.0
    %1091 = vmatprep.subr.mxu0 0.0
    %1092 = vmatpush2.msra.mxu0 0.0
    %1093 = vmatprep.subr.mxu0 0.0
    %1094 = vmatpush2.msra.mxu0 0.0
    %1095 = vmatprep.subr.mxu0 0.0
    %1096 = vmatpush2.msra.mxu0 0.0
    %1097 = vmatprep.subr.mxu0 0.0
    %1098 = vmatpush2.msra.mxu0 0.0
    %1099 = vmatprep.subr.mxu0 0.0
    %1100 = vmatpush2.msra.mxu0 0.0
    %1101 = vmatprep.subr.mxu0 0.0
    %1102 = vmatpush2.msra.mxu0 0.0
    %1103 = vmatprep.subr.mxu0 0.0
    %1104 = vmatpush2.msra.mxu0 0.0
    %1105 = vmatprep.subr.mxu0 0.0
    %1106 = vmatpush2.msra.mxu0 0.0
    %1107 = vmatprep.subr.mxu0 0.0
    %1108 = vmatpush2.msra.mxu0 0.0
    %1109 = vmatprep.subr.mxu0 0.0
    %1110 = vmatpush2.msra.mxu0 0.0
    %1111 = vmatprep.subr.mxu0 0.0
    %1112 = vmatpush2.msra.mxu0 0.0
    %1113 = vmatprep.subr.mxu0 0.0
    %1114 = vmatpush2.msra.mxu0 0.0
    %1115 = vmatprep.subr.mxu0 0.0
    %1116 = vmatpush2.msra.mxu0 0.0
    %1117 = vmatprep.subr.mxu0 0.0
    %1118 = vmatpush2.msra.mxu0 0.0
    %1119 = vmatprep.mubr.f32.mxu0 0.0
    %1120 = vmatmul.mubr.f32.gmra.mxu0 %v1053
    %v1121 = vpop.f32.mrf.mxu0
    %v1122 = vadd.f32 %v1049, %v1121
    %v1123 = vpop.f32.mrf.mxu0
    %1124 = vdwg.mxu0
    %v1125 = vadd.f32 %v950, %v1122
    %v1126 = vld [vmem:[%s12] sm:$0x1]
    %v1127 = vld [vmem:[%s13] sm:$0x1]
    %v1128 = vsel %vm74, %v1125, 0.0
    %1129 = vadd.xlane.f32.xlu0 %v1128
    %v1130 = vpop.xlane.xlu0 %1129
    %v1131 = vmul.f32 %v1130, %v926
    %v1132 = vsub.f32 %v1125, %v1131
    %v1133 = vmul.f32 %v1132, %v1132
    %v1134 = vsel %vm74, %v1133, 0.0
    %1135 = vadd.xlane.f32.xlu0 %v1134
    %v1136 = vpop.xlane.xlu0 %1135
    %v1137 = vmul.f32 %v1136, %v926
    %v1138 = vadd.f32 %v1137, 1e-05
    %v1139 = vrsqrt.pop %v1138
    %v1140 = vmul.f32 %v1132, %v1139
    %v1142 = vlaneseq
    %v1143 = vshrl.u32 %v1142, 7
    %v1144 = vsub.s32 0, %v1143
    %v1145 = vrot.slane %v1126, %v1144
    %v1147 = vmul.f32 %v1140, %v1145
    %v1149 = vlaneseq
    %v1150 = vshrl.u32 %v1149, 7
    %v1151 = vsub.s32 0, %v1150
    %v1152 = vrot.slane %v1127, %v1151
    %v1154 = vadd.f32 %v1147, %v1152
    %s1155 = scalar_lea.vmem %s2, 32
    %v1156 = vld [vmem:[%s1155] sm:$0xff]
    %v1157 = vld [vmem:[%s1155 + $0x8] sm:$0xff]
    %v1158 = vld [vmem:[%s1155 + $0x10] sm:$0xff]
    %v1159 = vld [vmem:[%s1155 + $0x18] sm:$0xff]
    %s1160 = scalar_lea.vmem %s3, 1
    %v1161 = vld [vmem:[%s1160] sm:$0x1]
    %v1163 = vlaneseq
    %v1164 = vshrl.u32 %v1163, 7
    %v1165 = vsub.s32 0, %v1164
    %v1166 = vrot.slane %v1161, %v1165
    %v1169 = vsel %vm74, %v1154, 0
    %1171 = vmatprep.subr.mxu0 0.0
    %1172 = vmatpush1.msra.mxu0 0.0
    %1173 = vmatprep.subr.mxu0 0.0
    %1174 = vmatpush1.msra.mxu0 0.0
    %1175 = vmatprep.subr.mxu0 0.0
    %1176 = vmatpush1.msra.mxu0 0.0
    %1177 = vmatprep.subr.mxu0 0.0
    %1178 = vmatpush1.msra.mxu0 0.0
    %1179 = vmatprep.subr.mxu0 0.0
    %1180 = vmatpush1.msra.mxu0 0.0
    %1181 = vmatprep.subr.mxu0 0.0
    %1182 = vmatpush1.msra.mxu0 0.0
    %1183 = vmatprep.subr.mxu0 0.0
    %1184 = vmatpush1.msra.mxu0 0.0
    %1185 = vmatprep.subr.mxu0 0.0
    %1186 = vmatpush1.msra.mxu0 0.0
    %1187 = vmatprep.subr.mxu0 0.0
    %1188 = vmatpush1.msra.mxu0 0.0
    %1189 = vmatprep.subr.mxu0 0.0
    %1190 = vmatpush1.msra.mxu0 0.0
    %1191 = vmatprep.subr.mxu0 0.0
    %1192 = vmatpush1.msra.mxu0 0.0
    %1193 = vmatprep.subr.mxu0 0.0
    %1194 = vmatpush1.msra.mxu0 0.0
    %1195 = vmatprep.subr.mxu0 0.0
    %1196 = vmatpush1.msra.mxu0 %v1159
    %1197 = vmatprep.subr.mxu0 0.0
    %1198 = vmatpush1.msra.mxu0 %v1158
    %1199 = vmatprep.subr.mxu0 0.0
    %1200 = vmatpush1.msra.mxu0 %v1157
    %1201 = vmatprep.subr.mxu0 0.0
    %1202 = vmatpush1.msra.mxu0 %v1156
    %1203 = vmatprep.subr.mxu0 0.0
    %1204 = vmatpush2.msra.mxu0 0.0
    %1205 = vmatprep.subr.mxu0 0.0
    %1206 = vmatpush2.msra.mxu0 0.0
    %1207 = vmatprep.subr.mxu0 0.0
    %1208 = vmatpush2.msra.mxu0 0.0
    %1209 = vmatprep.subr.mxu0 0.0
    %1210 = vmatpush2.msra.mxu0 0.0
    %1211 = vmatprep.subr.mxu0 0.0
    %1212 = vmatpush2.msra.mxu0 0.0
    %1213 = vmatprep.subr.mxu0 0.0
    %1214 = vmatpush2.msra.mxu0 0.0
    %1215 = vmatprep.subr.mxu0 0.0
    %1216 = vmatpush2.msra.mxu0 0.0
    %1217 = vmatprep.subr.mxu0 0.0
    %1218 = vmatpush2.msra.mxu0 0.0
    %1219 = vmatprep.subr.mxu0 0.0
    %1220 = vmatpush2.msra.mxu0 0.0
    %1221 = vmatprep.subr.mxu0 0.0
    %1222 = vmatpush2.msra.mxu0 0.0
    %1223 = vmatprep.subr.mxu0 0.0
    %1224 = vmatpush2.msra.mxu0 0.0
    %1225 = vmatprep.subr.mxu0 0.0
    %1226 = vmatpush2.msra.mxu0 0.0
    %1227 = vmatprep.subr.mxu0 0.0
    %1228 = vmatpush2.msra.mxu0 0.0
    %1229 = vmatprep.subr.mxu0 0.0
    %1230 = vmatpush2.msra.mxu0 0.0
    %1231 = vmatprep.subr.mxu0 0.0
    %1232 = vmatpush2.msra.mxu0 0.0
    %1233 = vmatprep.subr.mxu0 0.0
    %1234 = vmatpush2.msra.mxu0 0.0
    %1235 = vmatprep.mubr.f32.mxu0 0.0
    %1236 = vmatmul.mubr.f32.gmra.mxu0 %v1169
    %v1237 = vpop.f32.mrf.mxu0
    %v1238 = vadd.f32 %v1166, %v1237
    %v1239 = vpop.f32.mrf.mxu0
    %1240 = vdwg.mxu0
    %1242 = vrot.lane.b32.xlu0 %v1238, 120
    %v1243 = vpop.permute.xlu0 %1242
    %1245 = vrot.lane.b32.xlu0 %v1238, 112
    %v1246 = vpop.permute.xlu0 %1245
    %1248 = vrot.lane.b32.xlu0 %v1238, 104
    %v1249 = vpop.permute.xlu0 %1248
    %v1251 = vmul.f32 %v1238, 0.35355338
    %v1252 = vmul.f32 %v1243, 0.35355338
    %v1253 = vmul.f32 %v1246, 0.35355338
    %v1254 = vmul.f32 %v1249, 0.35355338
    %1255 = vrot.lane.b32.xlu0 %v1238, 96
    %v1256 = vpop.permute.xlu0 %1255
    %v1258 = vsel %vm164, %v1251, 0
    %v1260 = vsel %vm164, %v1256, 0
    %1262 = vmatprep.subr.mxu0 0.0
    %1263 = vmatpush1.xpose.msra.mxu0 0.0
    %1264 = vmatprep.subr.mxu0 0.0
    %1265 = vmatpush1.xpose.msra.mxu0 0.0
    %1266 = vmatprep.subr.mxu0 0.0
    %1267 = vmatpush1.xpose.msra.mxu0 0.0
    %1268 = vmatprep.subr.mxu0 0.0
    %1269 = vmatpush1.xpose.msra.mxu0 0.0
    %1270 = vmatprep.subr.mxu0 0.0
    %1271 = vmatpush1.xpose.msra.mxu0 0.0
    %1272 = vmatprep.subr.mxu0 0.0
    %1273 = vmatpush1.xpose.msra.mxu0 0.0
    %1274 = vmatprep.subr.mxu0 0.0
    %1275 = vmatpush1.xpose.msra.mxu0 0.0
    %1276 = vmatprep.subr.mxu0 0.0
    %1277 = vmatpush1.xpose.msra.mxu0 0.0
    %1278 = vmatprep.subr.mxu0 0.0
    %1279 = vmatpush1.xpose.msra.mxu0 0.0
    %1280 = vmatprep.subr.mxu0 0.0
    %1281 = vmatpush1.xpose.msra.mxu0 0.0
    %1282 = vmatprep.subr.mxu0 0.0
    %1283 = vmatpush1.xpose.msra.mxu0 0.0
    %1284 = vmatprep.subr.mxu0 0.0
    %1285 = vmatpush1.xpose.msra.mxu0 0.0
    %1286 = vmatprep.subr.mxu0 0.0
    %1287 = vmatpush1.xpose.msra.mxu0 0.0
    %1288 = vmatprep.subr.mxu0 0.0
    %1289 = vmatpush1.xpose.msra.mxu0 0.0
    %1290 = vmatprep.subr.mxu0 0.0
    %1291 = vmatpush1.xpose.msra.mxu0 0.0
    %1292 = vmatprep.subr.mxu0 0.0
    %1293 = vmatpush1.xpose.msra.mxu0 %v1260
    %1294 = vmatprep.subr.mxu0 0.0
    %1295 = vmatpush2.xpose.msra.mxu0 0.0
    %1296 = vmatprep.subr.mxu0 0.0
    %1297 = vmatpush2.xpose.msra.mxu0 0.0
    %1298 = vmatprep.subr.mxu0 0.0
    %1299 = vmatpush2.xpose.msra.mxu0 0.0
    %1300 = vmatprep.subr.mxu0 0.0
    %1301 = vmatpush2.xpose.msra.mxu0 0.0
    %1302 = vmatprep.subr.mxu0 0.0
    %1303 = vmatpush2.xpose.msra.mxu0 0.0
    %1304 = vmatprep.subr.mxu0 0.0
    %1305 = vmatpush2.xpose.msra.mxu0 0.0
    %1306 = vmatprep.subr.mxu0 0.0
    %1307 = vmatpush2.xpose.msra.mxu0 0.0
    %1308 = vmatprep.subr.mxu0 0.0
    %1309 = vmatpush2.xpose.msra.mxu0 0.0
    %1310 = vmatprep.subr.mxu0 0.0
    %1311 = vmatpush2.xpose.msra.mxu0 0.0
    %1312 = vmatprep.subr.mxu0 0.0
    %1313 = vmatpush2.xpose.msra.mxu0 0.0
    %1314 = vmatprep.subr.mxu0 0.0
    %1315 = vmatpush2.xpose.msra.mxu0 0.0
    %1316 = vmatprep.subr.mxu0 0.0
    %1317 = vmatpush2.xpose.msra.mxu0 0.0
    %1318 = vmatprep.subr.mxu0 0.0
    %1319 = vmatpush2.xpose.msra.mxu0 0.0
    %1320 = vmatprep.subr.mxu0 0.0
    %1321 = vmatpush2.xpose.msra.mxu0 0.0
    %1322 = vmatprep.subr.mxu0 0.0
    %1323 = vmatpush2.xpose.msra.mxu0 0.0
    %1324 = vmatprep.subr.mxu0 0.0
    %1325 = vmatpush2.xpose.msra.mxu0 0.0
    %1326 = vmatprep.mubr.f32.mxu0 0.0
    %1327 = vmatmul.mubr.f32.gmra.mxu0 %v1258
    %v1328 = vpop.f32.mrf.mxu0
    %v1329 = vadd.f32 %v62, %v1328
    %v1330 = vpop.f32.mrf.mxu0
    %1331 = vdwg.mxu0
    %1332 = vrot.lane.b32.xlu0 %v1243, 96
    %v1333 = vpop.permute.xlu0 %1332
    %v1335 = vsel %vm164, %v1252, 0
    %v1337 = vsel %vm164, %v1333, 0
    %1339 = vmatprep.subr.mxu0 0.0
    %1340 = vmatpush1.xpose.msra.mxu0 0.0
    %1341 = vmatprep.subr.mxu0 0.0
    %1342 = vmatpush1.xpose.msra.mxu0 0.0
    %1343 = vmatprep.subr.mxu0 0.0
    %1344 = vmatpush1.xpose.msra.mxu0 0.0
    %1345 = vmatprep.subr.mxu0 0.0
    %1346 = vmatpush1.xpose.msra.mxu0 0.0
    %1347 = vmatprep.subr.mxu0 0.0
    %1348 = vmatpush1.xpose.msra.mxu0 0.0
    %1349 = vmatprep.subr.mxu0 0.0
    %1350 = vmatpush1.xpose.msra.mxu0 0.0
    %1351 = vmatprep.subr.mxu0 0.0
    %1352 = vmatpush1.xpose.msra.mxu0 0.0
    %1353 = vmatprep.subr.mxu0 0.0
    %1354 = vmatpush1.xpose.msra.mxu0 0.0
    %1355 = vmatprep.subr.mxu0 0.0
    %1356 = vmatpush1.xpose.msra.mxu0 0.0
    %1357 = vmatprep.subr.mxu0 0.0
    %1358 = vmatpush1.xpose.msra.mxu0 0.0
    %1359 = vmatprep.subr.mxu0 0.0
    %1360 = vmatpush1.xpose.msra.mxu0 0.0
    %1361 = vmatprep.subr.mxu0 0.0
    %1362 = vmatpush1.xpose.msra.mxu0 0.0
    %1363 = vmatprep.subr.mxu0 0.0
    %1364 = vmatpush1.xpose.msra.mxu0 0.0
    %1365 = vmatprep.subr.mxu0 0.0
    %1366 = vmatpush1.xpose.msra.mxu0 0.0
    %1367 = vmatprep.subr.mxu0 0.0
    %1368 = vmatpush1.xpose.msra.mxu0 0.0
    %1369 = vmatprep.subr.mxu0 0.0
    %1370 = vmatpush1.xpose.msra.mxu0 %v1337
    %1371 = vmatprep.subr.mxu0 0.0
    %1372 = vmatpush2.xpose.msra.mxu0 0.0
    %1373 = vmatprep.subr.mxu0 0.0
    %1374 = vmatpush2.xpose.msra.mxu0 0.0
    %1375 = vmatprep.subr.mxu0 0.0
    %1376 = vmatpush2.xpose.msra.mxu0 0.0
    %1377 = vmatprep.subr.mxu0 0.0
    %1378 = vmatpush2.xpose.msra.mxu0 0.0
    %1379 = vmatprep.subr.mxu0 0.0
    %1380 = vmatpush2.xpose.msra.mxu0 0.0
    %1381 = vmatprep.subr.mxu0 0.0
    %1382 = vmatpush2.xpose.msra.mxu0 0.0
    %1383 = vmatprep.subr.mxu0 0.0
    %1384 = vmatpush2.xpose.msra.mxu0 0.0
    %1385 = vmatprep.subr.mxu0 0.0
    %1386 = vmatpush2.xpose.msra.mxu0 0.0
    %1387 = vmatprep.subr.mxu0 0.0
    %1388 = vmatpush2.xpose.msra.mxu0 0.0
    %1389 = vmatprep.subr.mxu0 0.0
    %1390 = vmatpush2.xpose.msra.mxu0 0.0
    %1391 = vmatprep.subr.mxu0 0.0
    %1392 = vmatpush2.xpose.msra.mxu0 0.0
    %1393 = vmatprep.subr.mxu0 0.0
    %1394 = vmatpush2.xpose.msra.mxu0 0.0
    %1395 = vmatprep.subr.mxu0 0.0
    %1396 = vmatpush2.xpose.msra.mxu0 0.0
    %1397 = vmatprep.subr.mxu0 0.0
    %1398 = vmatpush2.xpose.msra.mxu0 0.0
    %1399 = vmatprep.subr.mxu0 0.0
    %1400 = vmatpush2.xpose.msra.mxu0 0.0
    %1401 = vmatprep.subr.mxu0 0.0
    %1402 = vmatpush2.xpose.msra.mxu0 0.0
    %1403 = vmatprep.mubr.f32.mxu0 0.0
    %1404 = vmatmul.mubr.f32.gmra.mxu0 %v1335
    %v1405 = vpop.f32.mrf.mxu0
    %v1406 = vadd.f32 %v62, %v1405
    %v1407 = vpop.f32.mrf.mxu0
    %1408 = vdwg.mxu0
    %1409 = vrot.lane.b32.xlu0 %v1246, 96
    %v1410 = vpop.permute.xlu0 %1409
    %v1412 = vsel %vm164, %v1253, 0
    %v1414 = vsel %vm164, %v1410, 0
    %1416 = vmatprep.subr.mxu0 0.0
    %1417 = vmatpush1.xpose.msra.mxu0 0.0
    %1418 = vmatprep.subr.mxu0 0.0
    %1419 = vmatpush1.xpose.msra.mxu0 0.0
    %1420 = vmatprep.subr.mxu0 0.0
    %1421 = vmatpush1.xpose.msra.mxu0 0.0
    %1422 = vmatprep.subr.mxu0 0.0
    %1423 = vmatpush1.xpose.msra.mxu0 0.0
    %1424 = vmatprep.subr.mxu0 0.0
    %1425 = vmatpush1.xpose.msra.mxu0 0.0
    %1426 = vmatprep.subr.mxu0 0.0
    %1427 = vmatpush1.xpose.msra.mxu0 0.0
    %1428 = vmatprep.subr.mxu0 0.0
    %1429 = vmatpush1.xpose.msra.mxu0 0.0
    %1430 = vmatprep.subr.mxu0 0.0
    %1431 = vmatpush1.xpose.msra.mxu0 0.0
    %1432 = vmatprep.subr.mxu0 0.0
    %1433 = vmatpush1.xpose.msra.mxu0 0.0
    %1434 = vmatprep.subr.mxu0 0.0
    %1435 = vmatpush1.xpose.msra.mxu0 0.0
    %1436 = vmatprep.subr.mxu0 0.0
    %1437 = vmatpush1.xpose.msra.mxu0 0.0
    %1438 = vmatprep.subr.mxu0 0.0
    %1439 = vmatpush1.xpose.msra.mxu0 0.0
    %1440 = vmatprep.subr.mxu0 0.0
    %1441 = vmatpush1.xpose.msra.mxu0 0.0
    %1442 = vmatprep.subr.mxu0 0.0
    %1443 = vmatpush1.xpose.msra.mxu0 0.0
    %1444 = vmatprep.subr.mxu0 0.0
    %1445 = vmatpush1.xpose.msra.mxu0 0.0
    %1446 = vmatprep.subr.mxu0 0.0
    %1447 = vmatpush1.xpose.msra.mxu0 %v1414
    %1448 = vmatprep.subr.mxu0 0.0
    %1449 = vmatpush2.xpose.msra.mxu0 0.0
    %1450 = vmatprep.subr.mxu0 0.0
    %1451 = vmatpush2.xpose.msra.mxu0 0.0
    %1452 = vmatprep.subr.mxu0 0.0
    %1453 = vmatpush2.xpose.msra.mxu0 0.0
    %1454 = vmatprep.subr.mxu0 0.0
    %1455 = vmatpush2.xpose.msra.mxu0 0.0
    %1456 = vmatprep.subr.mxu0 0.0
    %1457 = vmatpush2.xpose.msra.mxu0 0.0
    %1458 = vmatprep.subr.mxu0 0.0
    %1459 = vmatpush2.xpose.msra.mxu0 0.0
    %1460 = vmatprep.subr.mxu0 0.0
    %1461 = vmatpush2.xpose.msra.mxu0 0.0
    %1462 = vmatprep.subr.mxu0 0.0
    %1463 = vmatpush2.xpose.msra.mxu0 0.0
    %1464 = vmatprep.subr.mxu0 0.0
    %1465 = vmatpush2.xpose.msra.mxu0 0.0
    %1466 = vmatprep.subr.mxu0 0.0
    %1467 = vmatpush2.xpose.msra.mxu0 0.0
    %1468 = vmatprep.subr.mxu0 0.0
    %1469 = vmatpush2.xpose.msra.mxu0 0.0
    %1470 = vmatprep.subr.mxu0 0.0
    %1471 = vmatpush2.xpose.msra.mxu0 0.0
    %1472 = vmatprep.subr.mxu0 0.0
    %1473 = vmatpush2.xpose.msra.mxu0 0.0
    %1474 = vmatprep.subr.mxu0 0.0
    %1475 = vmatpush2.xpose.msra.mxu0 0.0
    %1476 = vmatprep.subr.mxu0 0.0
    %1477 = vmatpush2.xpose.msra.mxu0 0.0
    %1478 = vmatprep.subr.mxu0 0.0
    %1479 = vmatpush2.xpose.msra.mxu0 0.0
    %1480 = vmatprep.mubr.f32.mxu0 0.0
    %1481 = vmatmul.mubr.f32.gmra.mxu0 %v1412
    %v1482 = vpop.f32.mrf.mxu0
    %v1483 = vadd.f32 %v62, %v1482
    %v1484 = vpop.f32.mrf.mxu0
    %1485 = vdwg.mxu0
    %1486 = vrot.lane.b32.xlu0 %v1249, 96
    %v1487 = vpop.permute.xlu0 %1486
    %v1489 = vsel %vm164, %v1254, 0
    %v1491 = vsel %vm164, %v1487, 0
    %1493 = vmatprep.subr.mxu0 0.0
    %1494 = vmatpush1.xpose.msra.mxu0 0.0
    %1495 = vmatprep.subr.mxu0 0.0
    %1496 = vmatpush1.xpose.msra.mxu0 0.0
    %1497 = vmatprep.subr.mxu0 0.0
    %1498 = vmatpush1.xpose.msra.mxu0 0.0
    %1499 = vmatprep.subr.mxu0 0.0
    %1500 = vmatpush1.xpose.msra.mxu0 0.0
    %1501 = vmatprep.subr.mxu0 0.0
    %1502 = vmatpush1.xpose.msra.mxu0 0.0
    %1503 = vmatprep.subr.mxu0 0.0
    %1504 = vmatpush1.xpose.msra.mxu0 0.0
    %1505 = vmatprep.subr.mxu0 0.0
    %1506 = vmatpush1.xpose.msra.mxu0 0.0
    %1507 = vmatprep.subr.mxu0 0.0
    %1508 = vmatpush1.xpose.msra.mxu0 0.0
    %1509 = vmatprep.subr.mxu0 0.0
    %1510 = vmatpush1.xpose.msra.mxu0 0.0
    %1511 = vmatprep.subr.mxu0 0.0
    %1512 = vmatpush1.xpose.msra.mxu0 0.0
    %1513 = vmatprep.subr.mxu0 0.0
    %1514 = vmatpush1.xpose.msra.mxu0 0.0
    %1515 = vmatprep.subr.mxu0 0.0
    %1516 = vmatpush1.xpose.msra.mxu0 0.0
    %1517 = vmatprep.subr.mxu0 0.0
    %1518 = vmatpush1.xpose.msra.mxu0 0.0
    %1519 = vmatprep.subr.mxu0 0.0
    %1520 = vmatpush1.xpose.msra.mxu0 0.0
    %1521 = vmatprep.subr.mxu0 0.0
    %1522 = vmatpush1.xpose.msra.mxu0 0.0
    %1523 = vmatprep.subr.mxu0 0.0
    %1524 = vmatpush1.xpose.msra.mxu0 %v1491
    %1525 = vmatprep.subr.mxu0 0.0
    %1526 = vmatpush2.xpose.msra.mxu0 0.0
    %1527 = vmatprep.subr.mxu0 0.0
    %1528 = vmatpush2.xpose.msra.mxu0 0.0
    %1529 = vmatprep.subr.mxu0 0.0
    %1530 = vmatpush2.xpose.msra.mxu0 0.0
    %1531 = vmatprep.subr.mxu0 0.0
    %1532 = vmatpush2.xpose.msra.mxu0 0.0
    %1533 = vmatprep.subr.mxu0 0.0
    %1534 = vmatpush2.xpose.msra.mxu0 0.0
    %1535 = vmatprep.subr.mxu0 0.0
    %1536 = vmatpush2.xpose.msra.mxu0 0.0
    %1537 = vmatprep.subr.mxu0 0.0
    %1538 = vmatpush2.xpose.msra.mxu0 0.0
    %1539 = vmatprep.subr.mxu0 0.0
    %1540 = vmatpush2.xpose.msra.mxu0 0.0
    %1541 = vmatprep.subr.mxu0 0.0
    %1542 = vmatpush2.xpose.msra.mxu0 0.0
    %1543 = vmatprep.subr.mxu0 0.0
    %1544 = vmatpush2.xpose.msra.mxu0 0.0
    %1545 = vmatprep.subr.mxu0 0.0
    %1546 = vmatpush2.xpose.msra.mxu0 0.0
    %1547 = vmatprep.subr.mxu0 0.0
    %1548 = vmatpush2.xpose.msra.mxu0 0.0
    %1549 = vmatprep.subr.mxu0 0.0
    %1550 = vmatpush2.xpose.msra.mxu0 0.0
    %1551 = vmatprep.subr.mxu0 0.0
    %1552 = vmatpush2.xpose.msra.mxu0 0.0
    %1553 = vmatprep.subr.mxu0 0.0
    %1554 = vmatpush2.xpose.msra.mxu0 0.0
    %1555 = vmatprep.subr.mxu0 0.0
    %1556 = vmatpush2.xpose.msra.mxu0 0.0
    %1557 = vmatprep.mubr.f32.mxu0 0.0
    %1558 = vmatmul.mubr.f32.gmra.mxu0 %v1489
    %v1559 = vpop.f32.mrf.mxu0
    %v1560 = vadd.f32 %v62, %v1559
    %v1561 = vpop.f32.mrf.mxu0
    %1562 = vdwg.mxu0
    %v1563 = vsel %vm164, %v1329, -inf
    %1564 = vmax.xlane.f32.xlu0 %v1563
    %v1565 = vpop.xlane.xlu0 %1564
    %v1566 = vsel %vm164, %v1406, -inf
    %1567 = vmax.xlane.f32.xlu0 %v1566
    %v1568 = vpop.xlane.xlu0 %1567
    %v1569 = vsel %vm164, %v1483, -inf
    %1570 = vmax.xlane.f32.xlu0 %v1569
    %v1571 = vpop.xlane.xlu0 %1570
    %v1572 = vsel %vm164, %v1560, -inf
    %1573 = vmax.xlane.f32.xlu0 %v1572
    %v1574 = vpop.xlane.xlu0 %1573
    %v1575 = vsub.f32 %v1329, %v1565
    %v1576 = vsub.f32 %v1406, %v1568
    %v1577 = vsub.f32 %v1483, %v1571
    %v1578 = vsub.f32 %v1560, %v1574
    %v1579 = vmul.f32 %v1575, 1.442695
    %v1580 = vpow.pop %v1579
    %v1581 = vmul.f32 %v1576, 1.442695
    %v1582 = vpow.pop %v1581
    %v1583 = vmul.f32 %v1577, 1.442695
    %v1584 = vpow.pop %v1583
    %v1585 = vmul.f32 %v1578, 1.442695
    %v1586 = vpow.pop %v1585
    %v1587 = vsel %vm164, %v1580, 0.0
    %1588 = vadd.xlane.f32.xlu0 %v1587
    %v1589 = vpop.xlane.xlu0 %1588
    %v1590 = vsel %vm164, %v1582, 0.0
    %1591 = vadd.xlane.f32.xlu0 %v1590
    %v1592 = vpop.xlane.xlu0 %1591
    %v1593 = vsel %vm164, %v1584, 0.0
    %1594 = vadd.xlane.f32.xlu0 %v1593
    %v1595 = vpop.xlane.xlu0 %1594
    %v1596 = vsel %vm164, %v1586, 0.0
    %1597 = vadd.xlane.f32.xlu0 %v1596
    %v1598 = vpop.xlane.xlu0 %1597
    %v1599 = vrcp.pop %v1589
    %v1600 = vrcp.pop %v1592
    %v1601 = vrcp.pop %v1595
    %v1602 = vrcp.pop %v1598
    %v1603 = vmul.f32 %v1580, %v1599
    %v1604 = vmul.f32 %v1582, %v1600
    %v1605 = vmul.f32 %v1584, %v1601
    %v1606 = vmul.f32 %v1586, %v1602
    %1607 = vrot.lane.b32.xlu0 %v1238, 64
    %v1608 = vpop.permute.xlu0 %1607
    %v1611 = vsel %vm164, %v1603, 0
    %1613 = vmatprep.subr.mxu0 0.0
    %1614 = vmatpush1.msra.mxu0 0.0
    %1615 = vmatprep.subr.mxu0 0.0
    %1616 = vmatpush1.msra.mxu0 0.0
    %1617 = vmatprep.subr.mxu0 0.0
    %1618 = vmatpush1.msra.mxu0 0.0
    %1619 = vmatprep.subr.mxu0 0.0
    %1620 = vmatpush1.msra.mxu0 0.0
    %1621 = vmatprep.subr.mxu0 0.0
    %1622 = vmatpush1.msra.mxu0 0.0
    %1623 = vmatprep.subr.mxu0 0.0
    %1624 = vmatpush1.msra.mxu0 0.0
    %1625 = vmatprep.subr.mxu0 0.0
    %1626 = vmatpush1.msra.mxu0 0.0
    %1627 = vmatprep.subr.mxu0 0.0
    %1628 = vmatpush1.msra.mxu0 0.0
    %1629 = vmatprep.subr.mxu0 0.0
    %1630 = vmatpush1.msra.mxu0 0.0
    %1631 = vmatprep.subr.mxu0 0.0
    %1632 = vmatpush1.msra.mxu0 0.0
    %1633 = vmatprep.subr.mxu0 0.0
    %1634 = vmatpush1.msra.mxu0 0.0
    %1635 = vmatprep.subr.mxu0 0.0
    %1636 = vmatpush1.msra.mxu0 0.0
    %1637 = vmatprep.subr.mxu0 0.0
    %1638 = vmatpush1.msra.mxu0 0.0
    %1639 = vmatprep.subr.mxu0 0.0
    %1640 = vmatpush1.msra.mxu0 0.0
    %1641 = vmatprep.subr.mxu0 0.0
    %1642 = vmatpush1.msra.mxu0 0.0
    %1643 = vmatprep.subr.mxu0 0.0
    %1644 = vmatpush1.msra.mxu0 %v1608
    %1645 = vmatprep.subr.mxu0 0.0
    %1646 = vmatpush2.msra.mxu0 0.0
    %1647 = vmatprep.subr.mxu0 0.0
    %1648 = vmatpush2.msra.mxu0 0.0
    %1649 = vmatprep.subr.mxu0 0.0
    %1650 = vmatpush2.msra.mxu0 0.0
    %1651 = vmatprep.subr.mxu0 0.0
    %1652 = vmatpush2.msra.mxu0 0.0
    %1653 = vmatprep.subr.mxu0 0.0
    %1654 = vmatpush2.msra.mxu0 0.0
    %1655 = vmatprep.subr.mxu0 0.0
    %1656 = vmatpush2.msra.mxu0 0.0
    %1657 = vmatprep.subr.mxu0 0.0
    %1658 = vmatpush2.msra.mxu0 0.0
    %1659 = vmatprep.subr.mxu0 0.0
    %1660 = vmatpush2.msra.mxu0 0.0
    %1661 = vmatprep.subr.mxu0 0.0
    %1662 = vmatpush2.msra.mxu0 0.0
    %1663 = vmatprep.subr.mxu0 0.0
    %1664 = vmatpush2.msra.mxu0 0.0
    %1665 = vmatprep.subr.mxu0 0.0
    %1666 = vmatpush2.msra.mxu0 0.0
    %1667 = vmatprep.subr.mxu0 0.0
    %1668 = vmatpush2.msra.mxu0 0.0
    %1669 = vmatprep.subr.mxu0 0.0
    %1670 = vmatpush2.msra.mxu0 0.0
    %1671 = vmatprep.subr.mxu0 0.0
    %1672 = vmatpush2.msra.mxu0 0.0
    %1673 = vmatprep.subr.mxu0 0.0
    %1674 = vmatpush2.msra.mxu0 0.0
    %1675 = vmatprep.subr.mxu0 0.0
    %1676 = vmatpush2.msra.mxu0 0.0
    %1677 = vmatprep.mubr.f32.mxu0 0.0
    %1678 = vmatmul.mubr.f32.gmra.mxu0 %v1611
    %v1679 = vpop.f32.mrf.mxu0
    %v1680 = vadd.f32 0.0, %v1679
    %v1681 = vpop.f32.mrf.mxu0
    %1682 = vdwg.mxu0
    %1683 = vrot.lane.b32.xlu0 %v1243, 64
    %v1684 = vpop.permute.xlu0 %1683
    %v1687 = vsel %vm164, %v1604, 0
    %1689 = vmatprep.subr.mxu0 0.0
    %1690 = vmatpush1.msra.mxu0 0.0
    %1691 = vmatprep.subr.mxu0 0.0
    %1692 = vmatpush1.msra.mxu0 0.0
    %1693 = vmatprep.subr.mxu0 0.0
    %1694 = vmatpush1.msra.mxu0 0.0
    %1695 = vmatprep.subr.mxu0 0.0
    %1696 = vmatpush1.msra.mxu0 0.0
    %1697 = vmatprep.subr.mxu0 0.0
    %1698 = vmatpush1.msra.mxu0 0.0
    %1699 = vmatprep.subr.mxu0 0.0
    %1700 = vmatpush1.msra.mxu0 0.0
    %1701 = vmatprep.subr.mxu0 0.0
    %1702 = vmatpush1.msra.mxu0 0.0
    %1703 = vmatprep.subr.mxu0 0.0
    %1704 = vmatpush1.msra.mxu0 0.0
    %1705 = vmatprep.subr.mxu0 0.0
    %1706 = vmatpush1.msra.mxu0 0.0
    %1707 = vmatprep.subr.mxu0 0.0
    %1708 = vmatpush1.msra.mxu0 0.0
    %1709 = vmatprep.subr.mxu0 0.0
    %1710 = vmatpush1.msra.mxu0 0.0
    %1711 = vmatprep.subr.mxu0 0.0
    %1712 = vmatpush1.msra.mxu0 0.0
    %1713 = vmatprep.subr.mxu0 0.0
    %1714 = vmatpush1.msra.mxu0 0.0
    %1715 = vmatprep.subr.mxu0 0.0
    %1716 = vmatpush1.msra.mxu0 0.0
    %1717 = vmatprep.subr.mxu0 0.0
    %1718 = vmatpush1.msra.mxu0 0.0
    %1719 = vmatprep.subr.mxu0 0.0
    %1720 = vmatpush1.msra.mxu0 %v1684
    %1721 = vmatprep.subr.mxu0 0.0
    %1722 = vmatpush2.msra.mxu0 0.0
    %1723 = vmatprep.subr.mxu0 0.0
    %1724 = vmatpush2.msra.mxu0 0.0
    %1725 = vmatprep.subr.mxu0 0.0
    %1726 = vmatpush2.msra.mxu0 0.0
    %1727 = vmatprep.subr.mxu0 0.0
    %1728 = vmatpush2.msra.mxu0 0.0
    %1729 = vmatprep.subr.mxu0 0.0
    %1730 = vmatpush2.msra.mxu0 0.0
    %1731 = vmatprep.subr.mxu0 0.0
    %1732 = vmatpush2.msra.mxu0 0.0
    %1733 = vmatprep.subr.mxu0 0.0
    %1734 = vmatpush2.msra.mxu0 0.0
    %1735 = vmatprep.subr.mxu0 0.0
    %1736 = vmatpush2.msra.mxu0 0.0
    %1737 = vmatprep.subr.mxu0 0.0
    %1738 = vmatpush2.msra.mxu0 0.0
    %1739 = vmatprep.subr.mxu0 0.0
    %1740 = vmatpush2.msra.mxu0 0.0
    %1741 = vmatprep.subr.mxu0 0.0
    %1742 = vmatpush2.msra.mxu0 0.0
    %1743 = vmatprep.subr.mxu0 0.0
    %1744 = vmatpush2.msra.mxu0 0.0
    %1745 = vmatprep.subr.mxu0 0.0
    %1746 = vmatpush2.msra.mxu0 0.0
    %1747 = vmatprep.subr.mxu0 0.0
    %1748 = vmatpush2.msra.mxu0 0.0
    %1749 = vmatprep.subr.mxu0 0.0
    %1750 = vmatpush2.msra.mxu0 0.0
    %1751 = vmatprep.subr.mxu0 0.0
    %1752 = vmatpush2.msra.mxu0 0.0
    %1753 = vmatprep.mubr.f32.mxu0 0.0
    %1754 = vmatmul.mubr.f32.gmra.mxu0 %v1687
    %v1755 = vpop.f32.mrf.mxu0
    %v1756 = vadd.f32 0.0, %v1755
    %v1757 = vpop.f32.mrf.mxu0
    %1758 = vdwg.mxu0
    %1759 = vrot.lane.b32.xlu0 %v1246, 64
    %v1760 = vpop.permute.xlu0 %1759
    %v1763 = vsel %vm164, %v1605, 0
    %1765 = vmatprep.subr.mxu0 0.0
    %1766 = vmatpush1.msra.mxu0 0.0
    %1767 = vmatprep.subr.mxu0 0.0
    %1768 = vmatpush1.msra.mxu0 0.0
    %1769 = vmatprep.subr.mxu0 0.0
    %1770 = vmatpush1.msra.mxu0 0.0
    %1771 = vmatprep.subr.mxu0 0.0
    %1772 = vmatpush1.msra.mxu0 0.0
    %1773 = vmatprep.subr.mxu0 0.0
    %1774 = vmatpush1.msra.mxu0 0.0
    %1775 = vmatprep.subr.mxu0 0.0
    %1776 = vmatpush1.msra.mxu0 0.0
    %1777 = vmatprep.subr.mxu0 0.0
    %1778 = vmatpush1.msra.mxu0 0.0
    %1779 = vmatprep.subr.mxu0 0.0
    %1780 = vmatpush1.msra.mxu0 0.0
    %1781 = vmatprep.subr.mxu0 0.0
    %1782 = vmatpush1.msra.mxu0 0.0
    %1783 = vmatprep.subr.mxu0 0.0
    %1784 = vmatpush1.msra.mxu0 0.0
    %1785 = vmatprep.subr.mxu0 0.0
    %1786 = vmatpush1.msra.mxu0 0.0
    %1787 = vmatprep.subr.mxu0 0.0
    %1788 = vmatpush1.msra.mxu0 0.0
    %1789 = vmatprep.subr.mxu0 0.0
    %1790 = vmatpush1.msra.mxu0 0.0
    %1791 = vmatprep.subr.mxu0 0.0
    %1792 = vmatpush1.msra.mxu0 0.0
    %1793 = vmatprep.subr.mxu0 0.0
    %1794 = vmatpush1.msra.mxu0 0.0
    %1795 = vmatprep.subr.mxu0 0.0
    %1796 = vmatpush1.msra.mxu0 %v1760
    %1797 = vmatprep.subr.mxu0 0.0
    %1798 = vmatpush2.msra.mxu0 0.0
    %1799 = vmatprep.subr.mxu0 0.0
    %1800 = vmatpush2.msra.mxu0 0.0
    %1801 = vmatprep.subr.mxu0 0.0
    %1802 = vmatpush2.msra.mxu0 0.0
    %1803 = vmatprep.subr.mxu0 0.0
    %1804 = vmatpush2.msra.mxu0 0.0
    %1805 = vmatprep.subr.mxu0 0.0
    %1806 = vmatpush2.msra.mxu0 0.0
    %1807 = vmatprep.subr.mxu0 0.0
    %1808 = vmatpush2.msra.mxu0 0.0
    %1809 = vmatprep.subr.mxu0 0.0
    %1810 = vmatpush2.msra.mxu0 0.0
    %1811 = vmatprep.subr.mxu0 0.0
    %1812 = vmatpush2.msra.mxu0 0.0
    %1813 = vmatprep.subr.mxu0 0.0
    %1814 = vmatpush2.msra.mxu0 0.0
    %1815 = vmatprep.subr.mxu0 0.0
    %1816 = vmatpush2.msra.mxu0 0.0
    %1817 = vmatprep.subr.mxu0 0.0
    %1818 = vmatpush2.msra.mxu0 0.0
    %1819 = vmatprep.subr.mxu0 0.0
    %1820 = vmatpush2.msra.mxu0 0.0
    %1821 = vmatprep.subr.mxu0 0.0
    %1822 = vmatpush2.msra.mxu0 0.0
    %1823 = vmatprep.subr.mxu0 0.0
    %1824 = vmatpush2.msra.mxu0 0.0
    %1825 = vmatprep.subr.mxu0 0.0
    %1826 = vmatpush2.msra.mxu0 0.0
    %1827 = vmatprep.subr.mxu0 0.0
    %1828 = vmatpush2.msra.mxu0 0.0
    %1829 = vmatprep.mubr.f32.mxu0 0.0
    %1830 = vmatmul.mubr.f32.gmra.mxu0 %v1763
    %v1831 = vpop.f32.mrf.mxu0
    %v1832 = vadd.f32 0.0, %v1831
    %v1833 = vpop.f32.mrf.mxu0
    %1834 = vdwg.mxu0
    %1835 = vrot.lane.b32.xlu0 %v1249, 64
    %v1836 = vpop.permute.xlu0 %1835
    %v1839 = vsel %vm164, %v1606, 0
    %1841 = vmatprep.subr.mxu0 0.0
    %1842 = vmatpush1.msra.mxu0 0.0
    %1843 = vmatprep.subr.mxu0 0.0
    %1844 = vmatpush1.msra.mxu0 0.0
    %1845 = vmatprep.subr.mxu0 0.0
    %1846 = vmatpush1.msra.mxu0 0.0
    %1847 = vmatprep.subr.mxu0 0.0
    %1848 = vmatpush1.msra.mxu0 0.0
    %1849 = vmatprep.subr.mxu0 0.0
    %1850 = vmatpush1.msra.mxu0 0.0
    %1851 = vmatprep.subr.mxu0 0.0
    %1852 = vmatpush1.msra.mxu0 0.0
    %1853 = vmatprep.subr.mxu0 0.0
    %1854 = vmatpush1.msra.mxu0 0.0
    %1855 = vmatprep.subr.mxu0 0.0
    %1856 = vmatpush1.msra.mxu0 0.0
    %1857 = vmatprep.subr.mxu0 0.0
    %1858 = vmatpush1.msra.mxu0 0.0
    %1859 = vmatprep.subr.mxu0 0.0
    %1860 = vmatpush1.msra.mxu0 0.0
    %1861 = vmatprep.subr.mxu0 0.0
    %1862 = vmatpush1.msra.mxu0 0.0
    %1863 = vmatprep.subr.mxu0 0.0
    %1864 = vmatpush1.msra.mxu0 0.0
    %1865 = vmatprep.subr.mxu0 0.0
    %1866 = vmatpush1.msra.mxu0 0.0
    %1867 = vmatprep.subr.mxu0 0.0
    %1868 = vmatpush1.msra.mxu0 0.0
    %1869 = vmatprep.subr.mxu0 0.0
    %1870 = vmatpush1.msra.mxu0 0.0
    %1871 = vmatprep.subr.mxu0 0.0
    %1872 = vmatpush1.msra.mxu0 %v1836
    %1873 = vmatprep.subr.mxu0 0.0
    %1874 = vmatpush2.msra.mxu0 0.0
    %1875 = vmatprep.subr.mxu0 0.0
    %1876 = vmatpush2.msra.mxu0 0.0
    %1877 = vmatprep.subr.mxu0 0.0
    %1878 = vmatpush2.msra.mxu0 0.0
    %1879 = vmatprep.subr.mxu0 0.0
    %1880 = vmatpush2.msra.mxu0 0.0
    %1881 = vmatprep.subr.mxu0 0.0
    %1882 = vmatpush2.msra.mxu0 0.0
    %1883 = vmatprep.subr.mxu0 0.0
    %1884 = vmatpush2.msra.mxu0 0.0
    %1885 = vmatprep.subr.mxu0 0.0
    %1886 = vmatpush2.msra.mxu0 0.0
    %1887 = vmatprep.subr.mxu0 0.0
    %1888 = vmatpush2.msra.mxu0 0.0
    %1889 = vmatprep.subr.mxu0 0.0
    %1890 = vmatpush2.msra.mxu0 0.0
    %1891 = vmatprep.subr.mxu0 0.0
    %1892 = vmatpush2.msra.mxu0 0.0
    %1893 = vmatprep.subr.mxu0 0.0
    %1894 = vmatpush2.msra.mxu0 0.0
    %1895 = vmatprep.subr.mxu0 0.0
    %1896 = vmatpush2.msra.mxu0 0.0
    %1897 = vmatprep.subr.mxu0 0.0
    %1898 = vmatpush2.msra.mxu0 0.0
    %1899 = vmatprep.subr.mxu0 0.0
    %1900 = vmatpush2.msra.mxu0 0.0
    %1901 = vmatprep.subr.mxu0 0.0
    %1902 = vmatpush2.msra.mxu0 0.0
    %1903 = vmatprep.subr.mxu0 0.0
    %1904 = vmatpush2.msra.mxu0 0.0
    %1905 = vmatprep.mubr.f32.mxu0 0.0
    %1906 = vmatmul.mubr.f32.gmra.mxu0 %v1839
    %v1907 = vpop.f32.mrf.mxu0
    %v1908 = vadd.f32 0.0, %v1907
    %v1909 = vpop.f32.mrf.mxu0
    %1910 = vdwg.mxu0
    %1912 = vrot.lane.b32.xlu0 %v1756, 8
    %v1913 = vpop.permute.xlu0 %1912
    %1916 = vrot.lane.b32.xlu0 %v1832, 16
    %v1917 = vpop.permute.xlu0 %1916
    %1920 = vrot.lane.b32.xlu0 %v1908, 24
    %v1921 = vpop.permute.xlu0 %1920
    %v1923 = vsel %vm164, %v1680, %v1913
    %v1924 = vsel %vm832, %v1923, %v1917
    %v1925 = vsel %vm834, %v1924, %v1921
    %s1926 = scalar_lea.vmem %s4, 32
    %v1927 = vld [vmem:[%s1926] sm:$0xff]
    %v1928 = vld [vmem:[%s1926 + $0x8] sm:$0xff]
    %v1929 = vld [vmem:[%s1926 + $0x10] sm:$0xff]
    %v1930 = vld [vmem:[%s1926 + $0x18] sm:$0xff]
    %s1931 = scalar_lea.vmem %s5, 1
    %v1932 = vld [vmem:[%s1931] sm:$0x1]
    %v1934 = vlaneseq
    %v1935 = vshrl.u32 %v1934, 7
    %v1936 = vsub.s32 0, %v1935
    %v1937 = vrot.slane %v1932, %v1936
    %v1940 = vsel %vm74, %v1925, 0
    %1942 = vmatprep.subr.mxu0 0.0
    %1943 = vmatpush1.msra.mxu0 0.0
    %1944 = vmatprep.subr.mxu0 0.0
    %1945 = vmatpush1.msra.mxu0 0.0
    %1946 = vmatprep.subr.mxu0 0.0
    %1947 = vmatpush1.msra.mxu0 0.0
    %1948 = vmatprep.subr.mxu0 0.0
    %1949 = vmatpush1.msra.mxu0 0.0
    %1950 = vmatprep.subr.mxu0 0.0
    %1951 = vmatpush1.msra.mxu0 0.0
    %1952 = vmatprep.subr.mxu0 0.0
    %1953 = vmatpush1.msra.mxu0 0.0
    %1954 = vmatprep.subr.mxu0 0.0
    %1955 = vmatpush1.msra.mxu0 0.0
    %1956 = vmatprep.subr.mxu0 0.0
    %1957 = vmatpush1.msra.mxu0 0.0
    %1958 = vmatprep.subr.mxu0 0.0
    %1959 = vmatpush1.msra.mxu0 0.0
    %1960 = vmatprep.subr.mxu0 0.0
    %1961 = vmatpush1.msra.mxu0 0.0
    %1962 = vmatprep.subr.mxu0 0.0
    %1963 = vmatpush1.msra.mxu0 0.0
    %1964 = vmatprep.subr.mxu0 0.0
    %1965 = vmatpush1.msra.mxu0 0.0
    %1966 = vmatprep.subr.mxu0 0.0
    %1967 = vmatpush1.msra.mxu0 %v1930
    %1968 = vmatprep.subr.mxu0 0.0
    %1969 = vmatpush1.msra.mxu0 %v1929
    %1970 = vmatprep.subr.mxu0 0.0
    %1971 = vmatpush1.msra.mxu0 %v1928
    %1972 = vmatprep.subr.mxu0 0.0
    %1973 = vmatpush1.msra.mxu0 %v1927
    %1974 = vmatprep.subr.mxu0 0.0
    %1975 = vmatpush2.msra.mxu0 0.0
    %1976 = vmatprep.subr.mxu0 0.0
    %1977 = vmatpush2.msra.mxu0 0.0
    %1978 = vmatprep.subr.mxu0 0.0
    %1979 = vmatpush2.msra.mxu0 0.0
    %1980 = vmatprep.subr.mxu0 0.0
    %1981 = vmatpush2.msra.mxu0 0.0
    %1982 = vmatprep.subr.mxu0 0.0
    %1983 = vmatpush2.msra.mxu0 0.0
    %1984 = vmatprep.subr.mxu0 0.0
    %1985 = vmatpush2.msra.mxu0 0.0
    %1986 = vmatprep.subr.mxu0 0.0
    %1987 = vmatpush2.msra.mxu0 0.0
    %1988 = vmatprep.subr.mxu0 0.0
    %1989 = vmatpush2.msra.mxu0 0.0
    %1990 = vmatprep.subr.mxu0 0.0
    %1991 = vmatpush2.msra.mxu0 0.0
    %1992 = vmatprep.subr.mxu0 0.0
    %1993 = vmatpush2.msra.mxu0 0.0
    %1994 = vmatprep.subr.mxu0 0.0
    %1995 = vmatpush2.msra.mxu0 0.0
    %1996 = vmatprep.subr.mxu0 0.0
    %1997 = vmatpush2.msra.mxu0 0.0
    %1998 = vmatprep.subr.mxu0 0.0
    %1999 = vmatpush2.msra.mxu0 0.0
    %2000 = vmatprep.subr.mxu0 0.0
    %2001 = vmatpush2.msra.mxu0 0.0
    %2002 = vmatprep.subr.mxu0 0.0
    %2003 = vmatpush2.msra.mxu0 0.0
    %2004 = vmatprep.subr.mxu0 0.0
    %2005 = vmatpush2.msra.mxu0 0.0
    %2006 = vmatprep.mubr.f32.mxu0 0.0
    %2007 = vmatmul.mubr.f32.gmra.mxu0 %v1940
    %v2008 = vpop.f32.mrf.mxu0
    %v2009 = vadd.f32 %v1937, %v2008
    %v2010 = vpop.f32.mrf.mxu0
    %2011 = vdwg.mxu0
    %v2012 = vadd.f32 %v1154, %v2009
    %s2013 = scalar_lea.vmem %s10, 1
    %v2014 = vld [vmem:[%s2013] sm:$0x1]
    %s2015 = scalar_lea.vmem %s11, 1
    %v2016 = vld [vmem:[%s2015] sm:$0x1]
    %v2017 = vsel %vm74, %v2012, 0.0
    %2018 = vadd.xlane.f32.xlu0 %v2017
    %v2019 = vpop.xlane.xlu0 %2018
    %v2020 = vmul.f32 %v2019, %v926
    %v2021 = vsub.f32 %v2012, %v2020
    %v2022 = vmul.f32 %v2021, %v2021
    %v2023 = vsel %vm74, %v2022, 0.0
    %2024 = vadd.xlane.f32.xlu0 %v2023
    %v2025 = vpop.xlane.xlu0 %2024
    %v2026 = vmul.f32 %v2025, %v926
    %v2027 = vadd.f32 %v2026, 1e-05
    %v2028 = vrsqrt.pop %v2027
    %v2029 = vmul.f32 %v2021, %v2028
    %v2031 = vlaneseq
    %v2032 = vshrl.u32 %v2031, 7
    %v2033 = vsub.s32 0, %v2032
    %v2034 = vrot.slane %v2014, %v2033
    %v2036 = vmul.f32 %v2029, %v2034
    %v2038 = vlaneseq
    %v2039 = vshrl.u32 %v2038, 7
    %v2040 = vsub.s32 0, %v2039
    %v2041 = vrot.slane %v2016, %v2040
    %v2043 = vadd.f32 %v2036, %v2041
    %s2044 = scalar_lea.vmem %s6, 32
    %v2045 = vld [vmem:[%s2044] sm:$0xff]
    %v2046 = vld [vmem:[%s2044 + $0x8] sm:$0xff]
    %v2047 = vld [vmem:[%s2044 + $0x10] sm:$0xff]
    %v2048 = vld [vmem:[%s2044 + $0x18] sm:$0xff]
    %s2049 = scalar_lea.vmem %s7, 1
    %v2050 = vld [vmem:[%s2049] sm:$0x1]
    %v2052 = vlaneseq
    %v2053 = vshrl.u32 %v2052, 7
    %v2054 = vsub.s32 0, %v2053
    %v2055 = vrot.slane %v2050, %v2054
    %v2058 = vsel %vm74, %v2043, 0
    %2060 = vmatprep.subr.mxu0 0.0
    %2061 = vmatpush1.msra.mxu0 0.0
    %2062 = vmatprep.subr.mxu0 0.0
    %2063 = vmatpush1.msra.mxu0 0.0
    %2064 = vmatprep.subr.mxu0 0.0
    %2065 = vmatpush1.msra.mxu0 0.0
    %2066 = vmatprep.subr.mxu0 0.0
    %2067 = vmatpush1.msra.mxu0 0.0
    %2068 = vmatprep.subr.mxu0 0.0
    %2069 = vmatpush1.msra.mxu0 0.0
    %2070 = vmatprep.subr.mxu0 0.0
    %2071 = vmatpush1.msra.mxu0 0.0
    %2072 = vmatprep.subr.mxu0 0.0
    %2073 = vmatpush1.msra.mxu0 0.0
    %2074 = vmatprep.subr.mxu0 0.0
    %2075 = vmatpush1.msra.mxu0 0.0
    %2076 = vmatprep.subr.mxu0 0.0
    %2077 = vmatpush1.msra.mxu0 0.0
    %2078 = vmatprep.subr.mxu0 0.0
    %2079 = vmatpush1.msra.mxu0 0.0
    %2080 = vmatprep.subr.mxu0 0.0
    %2081 = vmatpush1.msra.mxu0 0.0
    %2082 = vmatprep.subr.mxu0 0.0
    %2083 = vmatpush1.msra.mxu0 0.0
    %2084 = vmatprep.subr.mxu0 0.0
    %2085 = vmatpush1.msra.mxu0 %v2048
    %2086 = vmatprep.subr.mxu0 0.0
    %2087 = vmatpush1.msra.mxu0 %v2047
    %2088 = vmatprep.subr.mxu0 0.0
    %2089 = vmatpush1.msra.mxu0 %v2046
    %2090 = vmatprep.subr.mxu0 0.0
    %2091 = vmatpush1.msra.mxu0 %v2045
    %2092 = vmatprep.subr.mxu0 0.0
    %2093 = vmatpush2.msra.mxu0 0.0
    %2094 = vmatprep.subr.mxu0 0.0
    %2095 = vmatpush2.msra.mxu0 0.0
    %2096 = vmatprep.subr.mxu0 0.0
    %2097 = vmatpush2.msra.mxu0 0.0
    %2098 = vmatprep.subr.mxu0 0.0
    %2099 = vmatpush2.msra.mxu0 0.0
    %2100 = vmatprep.subr.mxu0 0.0
    %2101 = vmatpush2.msra.mxu0 0.0
    %2102 = vmatprep.subr.mxu0 0.0
    %2103 = vmatpush2.msra.mxu0 0.0
    %2104 = vmatprep.subr.mxu0 0.0
    %2105 = vmatpush2.msra.mxu0 0.0
    %2106 = vmatprep.subr.mxu0 0.0
    %2107 = vmatpush2.msra.mxu0 0.0
    %2108 = vmatprep.subr.mxu0 0.0
    %2109 = vmatpush2.msra.mxu0 0.0
    %2110 = vmatprep.subr.mxu0 0.0
    %2111 = vmatpush2.msra.mxu0 0.0
    %2112 = vmatprep.subr.mxu0 0.0
    %2113 = vmatpush2.msra.mxu0 0.0
    %2114 = vmatprep.subr.mxu0 0.0
    %2115 = vmatpush2.msra.mxu0 0.0
    %2116 = vmatprep.subr.mxu0 0.0
    %2117 = vmatpush2.msra.mxu0 0.0
    %2118 = vmatprep.subr.mxu0 0.0
    %2119 = vmatpush2.msra.mxu0 0.0
    %2120 = vmatprep.subr.mxu0 0.0
    %2121 = vmatpush2.msra.mxu0 0.0
    %2122 = vmatprep.subr.mxu0 0.0
    %2123 = vmatpush2.msra.mxu0 0.0
    %2124 = vmatprep.mubr.f32.mxu0 0.0
    %2125 = vmatmul.mubr.f32.gmra.mxu0 %v2058
    %v2126 = vpop.f32.mrf.mxu0
    %v2127 = vadd.f32 %v2055, %v2126
    %v2128 = vpop.f32.mrf.mxu0
    %2129 = vdwg.mxu0
    %v2130 = vmax.f32 %v2127, 0.0
    %s2131 = scalar_lea.vmem %s8, 64
    %v2132 = vld [vmem:[%s2131] sm:$0xff]
    %v2133 = vld [vmem:[%s2131 + $0x8] sm:$0xff]
    %v2134 = vld [vmem:[%s2131 + $0x10] sm:$0xff]
    %v2135 = vld [vmem:[%s2131 + $0x18] sm:$0xff]
    %v2136 = vld [vmem:[%s2131 + $0x20] sm:$0xff]
    %v2137 = vld [vmem:[%s2131 + $0x28] sm:$0xff]
    %v2138 = vld [vmem:[%s2131 + $0x30] sm:$0xff]
    %v2139 = vld [vmem:[%s2131 + $0x38] sm:$0xff]
    %s2140 = scalar_lea.vmem %s9, 1
    %v2141 = vld [vmem:[%s2140] sm:$0x1]
    %v2143 = vlaneseq
    %v2144 = vshrl.u32 %v2143, 7
    %v2145 = vsub.s32 0, %v2144
    %v2146 = vrot.slane %v2141, %v2145
    %v2149 = vsel %vm1051, %v2130, 0
    %2151 = vmatprep.subr.mxu0 0.0
    %2152 = vmatpush1.msra.mxu0 0.0
    %2153 = vmatprep.subr.mxu0 0.0
    %2154 = vmatpush1.msra.mxu0 0.0
    %2155 = vmatprep.subr.mxu0 0.0
    %2156 = vmatpush1.msra.mxu0 0.0
    %2157 = vmatprep.subr.mxu0 0.0
    %2158 = vmatpush1.msra.mxu0 0.0
    %2159 = vmatprep.subr.mxu0 0.0
    %2160 = vmatpush1.msra.mxu0 0.0
    %2161 = vmatprep.subr.mxu0 0.0
    %2162 = vmatpush1.msra.mxu0 0.0
    %2163 = vmatprep.subr.mxu0 0.0
    %2164 = vmatpush1.msra.mxu0 0.0
    %2165 = vmatprep.subr.mxu0 0.0
    %2166 = vmatpush1.msra.mxu0 0.0
    %2167 = vmatprep.subr.mxu0 0.0
    %2168 = vmatpush1.msra.mxu0 %v2139
    %2169 = vmatprep.subr.mxu0 0.0
    %2170 = vmatpush1.msra.mxu0 %v2138
    %2171 = vmatprep.subr.mxu0 0.0
    %2172 = vmatpush1.msra.mxu0 %v2137
    %2173 = vmatprep.subr.mxu0 0.0
    %2174 = vmatpush1.msra.mxu0 %v2136
    %2175 = vmatprep.subr.mxu0 0.0
    %2176 = vmatpush1.msra.mxu0 %v2135
    %2177 = vmatprep.subr.mxu0 0.0
    %2178 = vmatpush1.msra.mxu0 %v2134
    %2179 = vmatprep.subr.mxu0 0.0
    %2180 = vmatpush1.msra.mxu0 %v2133
    %2181 = vmatprep.subr.mxu0 0.0
    %2182 = vmatpush1.msra.mxu0 %v2132
    %2183 = vmatprep.subr.mxu0 0.0
    %2184 = vmatpush2.msra.mxu0 0.0
    %2185 = vmatprep.subr.mxu0 0.0
    %2186 = vmatpush2.msra.mxu0 0.0
    %2187 = vmatprep.subr.mxu0 0.0
    %2188 = vmatpush2.msra.mxu0 0.0
    %2189 = vmatprep.subr.mxu0 0.0
    %2190 = vmatpush2.msra.mxu0 0.0
    %2191 = vmatprep.subr.mxu0 0.0
    %2192 = vmatpush2.msra.mxu0 0.0
    %2193 = vmatprep.subr.mxu0 0.0
    %2194 = vmatpush2.msra.mxu0 0.0
    %2195 = vmatprep.subr.mxu0 0.0
    %2196 = vmatpush2.msra.mxu0 0.0
    %2197 = vmatprep.subr.mxu0 0.0
    %2198 = vmatpush2.msra.mxu0 0.0
    %2199 = vmatprep.subr.mxu0 0.0
    %2200 = vmatpush2.msra.mxu0 0.0
    %2201 = vmatprep.subr.mxu0 0.0
    %2202 = vmatpush2.msra.mxu0 0.0
    %2203 = vmatprep.subr.mxu0 0.0
    %2204 = vmatpush2.msra.mxu0 0.0
    %2205 = vmatprep.subr.mxu0 0.0
    %2206 = vmatpush2.msra.mxu0 0.0
    %2207 = vmatprep.subr.mxu0 0.0
    %2208 = vmatpush2.msra.mxu0 0.0
    %2209 = vmatprep.subr.mxu0 0.0
    %2210 = vmatpush2.msra.mxu0 0.0
    %2211 = vmatprep.subr.mxu0 0.0
    %2212 = vmatpush2.msra.mxu0 0.0
    %2213 = vmatprep.subr.mxu0 0.0
    %2214 = vmatpush2.msra.mxu0 0.0
    %2215 = vmatprep.mubr.f32.mxu0 0.0
    %2216 = vmatmul.mubr.f32.gmra.mxu0 %v2149
    %v2217 = vpop.f32.mrf.mxu0
    %v2218 = vadd.f32 %v2146, %v2217
    %v2219 = vpop.f32.mrf.mxu0
    %2220 = vdwg.mxu0
    %v2221 = vadd.f32 %v2043, %v2218
    %s2222 = scalar_lea.vmem %s12, 1
    %v2223 = vld [vmem:[%s2222] sm:$0x1]
    %s2224 = scalar_lea.vmem %s13, 1
    %v2225 = vld [vmem:[%s2224] sm:$0x1]
    %v2226 = vsel %vm74, %v2221, 0.0
    %2227 = vadd.xlane.f32.xlu0 %v2226
    %v2228 = vpop.xlane.xlu0 %2227
    %v2229 = vmul.f32 %v2228, %v926
    %v2230 = vsub.f32 %v2221, %v2229
    %v2231 = vmul.f32 %v2230, %v2230
    %v2232 = vsel %vm74, %v2231, 0.0
    %2233 = vadd.xlane.f32.xlu0 %v2232
    %v2234 = vpop.xlane.xlu0 %2233
    %v2235 = vmul.f32 %v2234, %v926
    %v2236 = vadd.f32 %v2235, 1e-05
    %v2237 = vrsqrt.pop %v2236
    %v2238 = vmul.f32 %v2230, %v2237
    %v2240 = vlaneseq
    %v2241 = vshrl.u32 %v2240, 7
    %v2242 = vsub.s32 0, %v2241
    %v2243 = vrot.slane %v2223, %v2242
    %v2245 = vmul.f32 %v2238, %v2243
    %v2247 = vlaneseq
    %v2248 = vshrl.u32 %v2247, 7
    %v2249 = vsub.s32 0, %v2248
    %v2250 = vrot.slane %v2225, %v2249
    %v2252 = vadd.f32 %v2245, %v2250
    %v2253 = vld [vmem:[%s14] sm:$0xff]
    %v2254 = vld [vmem:[%s14 + $0x8] sm:$0xff]
    %v2255 = vld [vmem:[%s14 + $0x10] sm:$0xff]
    %v2256 = vld [vmem:[%s14 + $0x18] sm:$0xff]
    %v2257 = vld [vmem:[%s15] sm:$0x1]
    %v2259 = vlaneseq
    %v2260 = vshrl.u32 %v2259, 7
    %v2261 = vsub.s32 0, %v2260
    %v2262 = vrot.slane %v2257, %v2261
    %v2265 = vsel %vm74, %v2252, 0
    %2267 = vmatprep.subr.mxu0 0.0
    %2268 = vmatpush1.msra.mxu0 0.0
    %2269 = vmatprep.subr.mxu0 0.0
    %2270 = vmatpush1.msra.mxu0 0.0
    %2271 = vmatprep.subr.mxu0 0.0
    %2272 = vmatpush1.msra.mxu0 0.0
    %2273 = vmatprep.subr.mxu0 0.0
    %2274 = vmatpush1.msra.mxu0 0.0
    %2275 = vmatprep.subr.mxu0 0.0
    %2276 = vmatpush1.msra.mxu0 0.0
    %2277 = vmatprep.subr.mxu0 0.0
    %2278 = vmatpush1.msra.mxu0 0.0
    %2279 = vmatprep.subr.mxu0 0.0
    %2280 = vmatpush1.msra.mxu0 0.0
    %2281 = vmatprep.subr.mxu0 0.0
    %2282 = vmatpush1.msra.mxu0 0.0
    %2283 = vmatprep.subr.mxu0 0.0
    %2284 = vmatpush1.msra.mxu0 0.0
    %2285 = vmatprep.subr.mxu0 0.0
    %2286 = vmatpush1.msra.mxu0 0.0
    %2287 = vmatprep.subr.mxu0 0.0
    %2288 = vmatpush1.msra.mxu0 0.0
    %2289 = vmatprep.subr.mxu0 0.0
    %2290 = vmatpush1.msra.mxu0 0.0
    %2291 = vmatprep.subr.mxu0 0.0
    %2292 = vmatpush1.msra.mxu0 %v2256
    %2293 = vmatprep.subr.mxu0 0.0
    %2294 = vmatpush1.msra.mxu0 %v2255
    %2295 = vmatprep.subr.mxu0 0.0
    %2296 = vmatpush1.msra.mxu0 %v2254
    %2297 = vmatprep.subr.mxu0 0.0
    %2298 = vmatpush1.msra.mxu0 %v2253
    %2299 = vmatprep.subr.mxu0 0.0
    %2300 = vmatpush2.msra.mxu0 0.0
    %2301 = vmatprep.subr.mxu0 0.0
    %2302 = vmatpush2.msra.mxu0 0.0
    %2303 = vmatprep.subr.mxu0 0.0
    %2304 = vmatpush2.msra.mxu0 0.0
    %2305 = vmatprep.subr.mxu0 0.0
    %2306 = vmatpush2.msra.mxu0 0.0
    %2307 = vmatprep.subr.mxu0 0.0
    %2308 = vmatpush2.msra.mxu0 0.0
    %2309 = vmatprep.subr.mxu0 0.0
    %2310 = vmatpush2.msra.mxu0 0.0
    %2311 = vmatprep.subr.mxu0 0.0
    %2312 = vmatpush2.msra.mxu0 0.0
    %2313 = vmatprep.subr.mxu0 0.0
    %2314 = vmatpush2.msra.mxu0 0.0
    %2315 = vmatprep.subr.mxu0 0.0
    %2316 = vmatpush2.msra.mxu0 0.0
    %2317 = vmatprep.subr.mxu0 0.0
    %2318 = vmatpush2.msra.mxu0 0.0
    %2319 = vmatprep.subr.mxu0 0.0
    %2320 = vmatpush2.msra.mxu0 0.0
    %2321 = vmatprep.subr.mxu0 0.0
    %2322 = vmatpush2.msra.mxu0 0.0
    %2323 = vmatprep.subr.mxu0 0.0
    %2324 = vmatpush2.msra.mxu0 0.0
    %2325 = vmatprep.subr.mxu0 0.0
    %2326 = vmatpush2.msra.mxu0 0.0
    %2327 = vmatprep.subr.mxu0 0.0
    %2328 = vmatpush2.msra.mxu0 0.0
    %2329 = vmatprep.subr.mxu0 0.0
    %2330 = vmatpush2.msra.mxu0 0.0
    %2331 = vmatprep.mubr.f32.mxu0 0.0
    %2332 = vmatmul.mubr.f32.gmra.mxu0 %v2265
    %v2333 = vpop.f32.mrf.mxu0
    %v2334 = vadd.f32 %v2262, %v2333
    %v2335 = vpop.f32.mrf.mxu0
    %2336 = vdwg.mxu0
    %2337 = vst.msk [vmem:[#allocation2] sm:$0xff] %vm832, %v2334
    // Predicated region
    $region66: #{tpu_custom_call.1} parent=1 // pred_check
      _
    $region67: #{tpu_custom_call.1} parent=1 // pred_check_branch
      %2339 = sbr.rel (0) target = $region69
    $region68: #{tpu_custom_call.1} parent=1 // pred_region
      %s2341 = ssub.s32 128, 128
      %2342 = vsyncadd [#allocation3], %s2341
      %s2344 = sshll.u32 [#allocation2], 4
      %s2345 = int_to_ptr.vmem [resolvable:$true] %s2344
      %2347 = dma.vmem_to_hbm [thread:$0]  %s2345, 128, %s16, [#allocation3]
    $region69: #{tpu_custom_call.1} parent=1 // pred_fallthru
      _
    // Predicated region
    $region70: #{tpu_custom_call.1} parent=1 // pred_check
      _
    $region71: #{tpu_custom_call.1} parent=1 // pred_check_branch
      %2349 = sbr.rel (0) target = $region73
    $region72: #{tpu_custom_call.1} parent=1 // pred_region
      %2350 = dma.done [#allocation3], 128
    $region73: #{tpu_custom_call.1} parent=1 // pred_fallthru
      _
    %2351 = vsyncpa [#allocation3], 1

</llo_original>
